<compile_context>
chip_gen: v6e
topology: v6e:2x2x1
jax: 0.10.0
libtpu: 0.0.40
codegen_flags: <defaults>
</compile_context>

<pallas_src>
import functools

import numpy as np
import jax
import jax.numpy as jnp
from jax.experimental import pallas as pl
from jax.experimental.pallas import tpu as pltpu


def _round_up(x, m):
    return ((x + m - 1) // m) * m


def attn_pooling_kernel(x_ref, w1_ref, b1_ref, w2_ref, b2_ref, out_ref, *, valid_k):
    f32 = jnp.float32
    tb, k, d = x_ref.shape
    x = x_ref[...]                                   # (tb, k, d), bf16
    xf = x.reshape(tb * k, d)                        # free relabel: k%8==0, d%128==0

    # Score MLP: Linear(d,d)+ReLU on the MXU (bf16 operands, f32 accumulate),
    # then Linear(d,1) as a VPU multiply + lane reduction (no 1-wide matmul).
    h = jnp.dot(xf, w1_ref[...], preferred_element_type=f32) + b1_ref[...]
    h = jnp.maximum(h, 0.0)                          # (tb*k, d) f32
    s = jnp.sum(h.reshape(tb, k, d) * w2_ref[...], axis=-1) + b2_ref[...]   # (tb, k)

    # torch.exp then softmax over the k tokens (matches the reference semantics,
    # including its exp-overflow behaviour); kept in f32.
    w = jnp.exp(s)                                   # (tb, k)
    if valid_k < k:
        tok = jax.lax.broadcasted_iota(jnp.int32, (tb, k), 1)
        w = jnp.where(tok < valid_k, w, -jnp.inf)    # padded tokens get zero weight
    m = jnp.max(w, axis=-1, keepdims=True)           # (tb, 1)
    e = jnp.exp(w - m)                               # (tb, k)
    inv = pl.reciprocal(jnp.sum(e, axis=-1, keepdims=True), approx=True)    # (tb, 1)

    # Attention-weighted token sum in f32; normalization deferred to one scale.
    acc = jnp.sum(x.astype(f32) * e[:, :, None], axis=1)                    # (tb, d)
    out_ref[...] = (acc * inv).astype(out_ref.dtype)


def make_params(key, dim):
    """torch.nn.Linear-style uniform init; weights stored as (in, out)."""
    k1w, k1b, k2w, k2b = jax.random.split(key, 4)
    bound = 1.0 / float(np.sqrt(dim))
    w1 = jax.random.uniform(k1w, (dim, dim), jnp.float32, -bound, bound)
    b1 = jax.random.uniform(k1b, (1, dim), jnp.float32, -bound, bound)
    # Linear(dim, 1): torch weight is (1, dim); keep it as a row for the lane-reduce.
    w2 = jax.random.uniform(k2w, (1, dim), jnp.float32, -bound, bound)
    b2 = jax.random.uniform(k2b, (1, 1), jnp.float32, -bound, bound)
    return [w1, b1, w2, b2]


def attn_pooling_forward(params, x, *, tile_b=None):
    w1, b1, w2, b2 = params
    C, N, K, D = x.shape
    B = C * N

    # Lane-dense last dim (multiple of 128) and sublane-aligned token dim.
    D_pad = _round_up(max(D, 1), 128)
    K_pad = _round_up(max(K, 1), 8)

    # bf16 for the large operands (the x read dominates HBM traffic; w1 feeds
    # the MXU). Biases / score-row weight stay f32; all non-matmul math is f32.
    xf = x.reshape(B, K, D).astype(jnp.bfloat16)
    xf = jnp.pad(xf, ((0, 0), (0, K_pad - K), (0, D_pad - D)))
    w1p = jnp.pad(w1.astype(jnp.bfloat16), ((0, D_pad - D), (0, D_pad - D)))
    b1p = jnp.pad(b1.astype(jnp.float32), ((0, 0), (0, D_pad - D)))
    w2p = jnp.pad(w2.astype(jnp.float32), ((0, 0), (0, D_pad - D)))
    b2p = b2.astype(jnp.float32)

    # Tile the flattened (c*n) batch so each grid step DMAs ~2 MiB of x
    # (HBM-bound kernel: large tiles amortize the ~0.35us/step grid overhead and
    # approach the HBM roofline), keep >= 2 grid steps so both v7x TensorCores
    # get work, and keep the per-step VMEM footprint inside a 64 MiB/TC budget.
    x_row_bytes = K_pad * D_pad * 2
    if tile_b is None:
        tile_b = _round_up(max((2 << 20) // x_row_bytes, 8), 8)
    tile_b = max(8, _round_up(int(tile_b), 8))
    tile_b = min(tile_b, max(8, _round_up(-(-B // 2), 8)))   # >= 2 steps when B allows

    def est_vmem(tb):
        x_tile = 2 * tb * K_pad * D_pad * 2          # double-buffered bf16 input tile
        out_tile = 2 * tb * D_pad * 4                # double-buffered f32 output tile
        wts = 2 * (D_pad * D_pad * 2 + 2 * D_pad * 4 + 4)   # worst case: 2x-buffered
        interm = 2 * tb * K_pad * D_pad * 4          # h (f32) + f32 upcast of x
        return x_tile + out_tile + wts + interm

    VMEM_BUDGET = 36 << 20                           # safe within v7x's 64 MiB/TC
    while tile_b > 8 and est_vmem(tile_b) > VMEM_BUDGET:
        tile_b -= 8
    vmem_limit = min(48 << 20, max(16 << 20, int(est_vmem(tile_b) * 1.5)))

    B_pad = _round_up(B, tile_b)
    if B_pad != B:
        xf = jnp.pad(xf, ((0, B_pad - B), (0, 0), (0, 0)))
    grid = (B_pad // tile_b,)

    kernel = functools.partial(attn_pooling_kernel, valid_k=K)

    flops = 2 * B_pad * K_pad * D_pad * D_pad + 8 * B_pad * K_pad * D_pad
    bytes_accessed = (xf.size * 2 + B_pad * D_pad * 4 + w1p.size * 2
                      + 4 * (b1p.size + w2p.size + b2p.size))
    cost = pl.CostEstimate(flops=flops,
                           transcendentals=2 * B_pad * K_pad + B_pad,
                           bytes_accessed=bytes_accessed)

    def run(single_buffer_weights):
        def wspec(shape):
            idx = lambda i: (0,) * len(shape)        # block index constant -> resident
            if single_buffer_weights:
                # Resident weights never change across the grid: one VMEM buffer
                # is enough (saves a duplicated DxD w1 copy; matters on v7x).
                return pl.BlockSpec(shape, idx, pipeline_mode=pl.Buffered(1))
            return pl.BlockSpec(shape, idx)

        return pl.pallas_call(
            kernel,
            out_shape=jax.ShapeDtypeStruct((B_pad, D_pad), jnp.float32),
            grid=grid,
            in_specs=[
                pl.BlockSpec((tile_b, K_pad, D_pad), lambda i: (i, 0, 0)),
                wspec(w1p.shape),
                wspec(b1p.shape),
                wspec(w2p.shape),
                wspec(b2p.shape),
            ],
            out_specs=pl.BlockSpec((tile_b, D_pad), lambda i: (i, 0)),
            compiler_params=pltpu.CompilerParams(
                dimension_semantics=("parallel",),
                vmem_limit_bytes=vmem_limit),
            cost_estimate=cost,
        )(xf, w1p, b1p, w2p, b2p)

    try:
        out = run(True)
    except Exception:  # pragma: no cover - jax without BlockSpec pipeline_mode
        out = run(False)

    return out[:B, :D].reshape(C, N, D)


def reference_numpy(params, x):
    """Pure numpy (f32) replica of the PyTorch attn_pooling forward."""
    w1, b1, w2, b2 = [np.asarray(p, np.float32) for p in params]
    x = np.asarray(x, np.float32)
    h = np.maximum(x @ w1 + b1, 0.0)                 # (C, N, K, D)
    s = h @ w2.reshape(-1, 1) + b2                   # (C, N, K, 1)
    a = np.exp(s)                                    # torch.exp
    a = np.exp(a - a.max(axis=-2, keepdims=True))    # softmax over k (stable)
    attn = a / a.sum(axis=-2, keepdims=True)         # (C, N, K, 1)
    out = np.matmul(np.swapaxes(x, -1, -2), attn)    # (C, N, D, 1)
    return np.squeeze(out)                           # (C, N, D)


if __name__ == "__main__":
    # Small shapes consistent with the module: x is (c, n, k, dim).
    C, N, K, D = 2, 8, 8, 32

    key = jax.random.PRNGKey(0)
    kx, kw = jax.random.split(key)
    x = jax.random.normal(kx, (C, N, K, D), jnp.float32)
    params = make_params(kw, D)

    out = attn_pooling_forward(params, x)            # default tiling -> 2 grid steps here
    out = jax.block_until_ready(out)

    ref = reference_numpy(params, x)
    assert out.shape == (C, N, D), out.shape
    out_np = np.asarray(out, np.float32)
    err = np.abs(out_np - ref).max()
    # x / w1 go through the MXU in bf16, so compare at bf16-level tolerance
    # against the f32 PyTorch-semantics reference.
    assert np.allclose(out_np, ref, rtol=5e-2, atol=5e-2), ("max abs diff %g" % err)

    print("KERNEL_OK")
</pallas_src>

<mosaic_0001>
module attributes {stable_mosaic.version = 11 : i64} {
  func.func @attn_pooling_kernel(%arg0: i32, %arg1: memref<8x8x128xbf16, #tpu.memory_space<vmem>>, %arg2: memref<128x128xbf16, #tpu.memory_space<vmem>>, %arg3: memref<1x128xf32, #tpu.memory_space<vmem>>, %arg4: memref<1x128xf32, #tpu.memory_space<vmem>>, %arg5: memref<1x1xf32, #tpu.memory_space<vmem>>, %arg6: memref<8x128xf32, #tpu.memory_space<vmem>>) attributes {dimension_semantics = [#tpu.dimension_semantics<parallel>], iteration_bounds = array<i64: 2>, scalar_prefetch = 0 : i64, scratch_operands = 0 : i64, tpu.core_type = #tpu.core_type<tc>, window_params = [{transform_indices = @transform_0, window_bounds = array<i64: 8, 8, 128>}, {pipeline_mode = #tpu.pipeline_mode<synchronous>, transform_indices = @transform_1, window_bounds = array<i64: 128, 128>}, {pipeline_mode = #tpu.pipeline_mode<synchronous>, transform_indices = @transform_2, window_bounds = array<i64: 1, 128>}, {pipeline_mode = #tpu.pipeline_mode<synchronous>, transform_indices = @transform_3, window_bounds = array<i64: 1, 128>}, {pipeline_mode = #tpu.pipeline_mode<synchronous>, transform_indices = @transform_4, window_bounds = array<i64: 1, 1>}, {transform_indices = @transform_5, window_bounds = array<i64: 8, 128>}]} {
    %c0 = arith.constant 0 : index
    %c0_0 = arith.constant 0 : index
    %c0_1 = arith.constant 0 : index
    %0 = vector.load %arg1[%c0, %c0_0, %c0_1] : memref<8x8x128xbf16, #tpu.memory_space<vmem>>, vector<8x8x128xbf16>
    %1 = vector.shape_cast %0 : vector<8x8x128xbf16> to vector<64x128xbf16>
    %c0_2 = arith.constant 0 : index
    %c0_3 = arith.constant 0 : index
    %2 = vector.load %arg2[%c0_2, %c0_3] : memref<128x128xbf16, #tpu.memory_space<vmem>>, vector<128x128xbf16>
    %cst = arith.constant dense<0.000000e+00> : vector<64x128xf32>
    %3 = tpu.matmul %1, %2, %cst {dimension_numbers = #tpu.dot_dimension_numbers<[1], [0], [0], [1], [0, 0, 1, 1], [], []>} : vector<64x128xbf16>, vector<128x128xbf16>, vector<64x128xf32> -> vector<64x128xf32>
    %c0_4 = arith.constant 0 : index
    %c0_5 = arith.constant 0 : index
    %4 = vector.load %arg3[%c0_4, %c0_5] : memref<1x128xf32, #tpu.memory_space<vmem>>, vector<1x128xf32>
    %5 = vector.broadcast %4 : vector<1x128xf32> to vector<64x128xf32>
    %6 = arith.addf %3, %5 : vector<64x128xf32>
    %cst_6 = arith.constant 0.000000e+00 : f32
    %7 = vector.broadcast %cst_6 : f32 to vector<64x128xf32>
    %8 = arith.maximumf %6, %7 : vector<64x128xf32>
    %9 = vector.shape_cast %8 : vector<64x128xf32> to vector<8x8x128xf32>
    %c0_7 = arith.constant 0 : index
    %c0_8 = arith.constant 0 : index
    %10 = vector.load %arg4[%c0_7, %c0_8] : memref<1x128xf32, #tpu.memory_space<vmem>>, vector<1x128xf32>
    %11 = vector.shape_cast %10 : vector<1x128xf32> to vector<1x1x128xf32>
    %12 = vector.broadcast %11 : vector<1x1x128xf32> to vector<8x8x128xf32>
    %13 = arith.mulf %9, %12 : vector<8x8x128xf32>
    %cst_9 = arith.constant dense<0.000000e+00> : vector<8x8xf32>
    %14 = vector.multi_reduction <add>, %13, %cst_9 [2] : vector<8x8x128xf32> to vector<8x8xf32>
    %c0_10 = arith.constant 0 : index
    %c0_11 = arith.constant 0 : index
    %15 = vector.load %arg5[%c0_10, %c0_11] : memref<1x1xf32, #tpu.memory_space<vmem>>, vector<1x1xf32>
    %16 = vector.broadcast %15 : vector<1x1xf32> to vector<8x8xf32>
    %17 = arith.addf %14, %16 : vector<8x8xf32>
    %18 = math.exp %17 : vector<8x8xf32>
    %cst_12 = arith.constant dense<0xFF800000> : vector<8xf32>
    %19 = vector.multi_reduction <maximumf>, %18, %cst_12 [1] : vector<8x8xf32> to vector<8xf32>
    %20 = vector.shape_cast %19 : vector<8xf32> to vector<8x1xf32>
    %21 = vector.broadcast %20 : vector<8x1xf32> to vector<8x8xf32>
    %22 = arith.subf %18, %21 : vector<8x8xf32>
    %23 = math.exp %22 : vector<8x8xf32>
    %cst_13 = arith.constant dense<0.000000e+00> : vector<8xf32>
    %24 = vector.multi_reduction <add>, %23, %cst_13 [1] : vector<8x8xf32> to vector<8xf32>
    %25 = vector.shape_cast %24 : vector<8xf32> to vector<8x1xf32>
    %26 = tpu.reciprocal %25 {approx = true} : vector<8x1xf32> -> vector<8x1xf32>
    %27 = arith.extf %0 : vector<8x8x128xbf16> to vector<8x8x128xf32>
    %28 = vector.shape_cast %23 : vector<8x8xf32> to vector<8x8x1xf32>
    %29 = vector.broadcast %28 : vector<8x8x1xf32> to vector<8x8x128xf32>
    %30 = arith.mulf %27, %29 : vector<8x8x128xf32>
    %cst_14 = arith.constant dense<0.000000e+00> : vector<8x128xf32>
    %31 = vector.multi_reduction <add>, %30, %cst_14 [1] : vector<8x8x128xf32> to vector<8x128xf32>
    %32 = vector.broadcast %26 : vector<8x1xf32> to vector<8x128xf32>
    %33 = arith.mulf %31, %32 : vector<8x128xf32>
    %c0_15 = arith.constant 0 : index
    %c0_16 = arith.constant 0 : index
    %34 = vector.load %arg6[%c0_15, %c0_16] : memref<8x128xf32, #tpu.memory_space<vmem>>, vector<8x128xf32>
    tpu.vector_store %arg6[%c0_15, %c0_16], %33 {strides = array<i32>} : memref<8x128xf32, #tpu.memory_space<vmem>>, vector<8x128xf32>,
    return
  }
  func.func @transform_0(%arg0: i32) -> (i32, i32, i32) {
    %c0_i32 = arith.constant 0 : i32
    %c0_i32_0 = arith.constant 0 : i32
    %c0_i32_1 = arith.constant 0 : i32
    return %arg0, %c0_i32, %c0_i32_0 : i32, i32, i32
  }
  func.func @transform_1(%arg0: i32) -> (i32, i32) {
    %c0_i32 = arith.constant 0 : i32
    %c0_i32_0 = arith.constant 0 : i32
    %c0_i32_1 = arith.constant 0 : i32
    return %c0_i32, %c0_i32_0 : i32, i32
  }
  func.func @transform_2(%arg0: i32) -> (i32, i32) {
    %c0_i32 = arith.constant 0 : i32
    %c0_i32_0 = arith.constant 0 : i32
    %c0_i32_1 = arith.constant 0 : i32
    return %c0_i32, %c0_i32_0 : i32, i32
  }
  func.func @transform_3(%arg0: i32) -> (i32, i32) {
    %c0_i32 = arith.constant 0 : i32
    %c0_i32_0 = arith.constant 0 : i32
    %c0_i32_1 = arith.constant 0 : i32
    return %c0_i32, %c0_i32_0 : i32, i32
  }
  func.func @transform_4(%arg0: i32) -> (i32, i32) {
    %c0_i32 = arith.constant 0 : i32
    %c0_i32_0 = arith.constant 0 : i32
    %c0_i32_1 = arith.constant 0 : i32
    return %c0_i32, %c0_i32_0 : i32, i32
  }
  func.func @transform_5(%arg0: i32) -> (i32, i32) {
    %c0_i32 = arith.constant 0 : i32
    %c0_i32_0 = arith.constant 0 : i32
    return %arg0, %c0_i32 : i32, i32
  }
}

module attributes {stable_mosaic.version = 11 : i64} {
  func.func @attn_pooling_kernel(%arg0: i32, %arg1: memref<8x8x128xbf16, #tpu.memory_space<vmem>>, %arg2: memref<128x128xbf16, #tpu.memory_space<vmem>>, %arg3: memref<1x128xf32, #tpu.memory_space<vmem>>, %arg4: memref<1x128xf32, #tpu.memory_space<vmem>>, %arg5: memref<1x1xf32, #tpu.memory_space<vmem>>, %arg6: memref<8x128xf32, #tpu.memory_space<vmem>>) attributes {dimension_semantics = [#tpu.dimension_semantics<parallel>], iteration_bounds = array<i64: 2>, scalar_prefetch = 0 : i64, scratch_operands = 0 : i64, tpu.core_type = #tpu.core_type<tc>, window_params = [{transform_indices = @transform_0, window_bounds = array<i64: 8, 8, 128>}, {pipeline_mode = #tpu.pipeline_mode<synchronous>, transform_indices = @transform_1, window_bounds = array<i64: 128, 128>}, {pipeline_mode = #tpu.pipeline_mode<synchronous>, transform_indices = @transform_2, window_bounds = array<i64: 1, 128>}, {pipeline_mode = #tpu.pipeline_mode<synchronous>, transform_indices = @transform_3, window_bounds = array<i64: 1, 128>}, {pipeline_mode = #tpu.pipeline_mode<synchronous>, transform_indices = @transform_4, window_bounds = array<i64: 1, 1>}, {transform_indices = @transform_5, window_bounds = array<i64: 8, 128>}]} {
    %c0 = arith.constant 0 : index
    %c0_0 = arith.constant 0 : index
    %c0_1 = arith.constant 0 : index
    %0 = vector.load %arg1[%c0, %c0_0, %c0_1] : memref<8x8x128xbf16, #tpu.memory_space<vmem>>, vector<8x8x128xbf16>
    %1 = vector.shape_cast %0 : vector<8x8x128xbf16> to vector<64x128xbf16>
    %c0_2 = arith.constant 0 : index
    %c0_3 = arith.constant 0 : index
    %2 = vector.load %arg2[%c0_2, %c0_3] : memref<128x128xbf16, #tpu.memory_space<vmem>>, vector<128x128xbf16>
    %cst = arith.constant dense<0.000000e+00> : vector<64x128xf32>
    %3 = tpu.matmul %1, %2, %cst {dimension_numbers = #tpu.dot_dimension_numbers<[1], [0], [0], [1], [0, 0, 1, 1], [], []>} : vector<64x128xbf16>, vector<128x128xbf16>, vector<64x128xf32> -> vector<64x128xf32>
    %c0_4 = arith.constant 0 : index
    %c0_5 = arith.constant 0 : index
    %4 = vector.load %arg3[%c0_4, %c0_5] : memref<1x128xf32, #tpu.memory_space<vmem>>, vector<1x128xf32>
    %5 = vector.broadcast %4 : vector<1x128xf32> to vector<64x128xf32>
    %6 = arith.addf %3, %5 : vector<64x128xf32>
    %cst_6 = arith.constant 0.000000e+00 : f32
    %7 = vector.broadcast %cst_6 : f32 to vector<64x128xf32>
    %8 = arith.maximumf %6, %7 : vector<64x128xf32>
    %9 = vector.shape_cast %8 : vector<64x128xf32> to vector<8x8x128xf32>
    %c0_7 = arith.constant 0 : index
    %c0_8 = arith.constant 0 : index
    %10 = vector.load %arg4[%c0_7, %c0_8] : memref<1x128xf32, #tpu.memory_space<vmem>>, vector<1x128xf32>
    %11 = vector.shape_cast %10 : vector<1x128xf32> to vector<1x1x128xf32>
    %12 = vector.broadcast %11 : vector<1x1x128xf32> to vector<8x8x128xf32>
    %13 = arith.mulf %9, %12 : vector<8x8x128xf32>
    %cst_9 = arith.constant dense<0.000000e+00> : vector<8x8xf32>
    %14 = vector.multi_reduction <add>, %13, %cst_9 [2] : vector<8x8x128xf32> to vector<8x8xf32>
    %c0_10 = arith.constant 0 : index
    %c0_11 = arith.constant 0 : index
    %15 = vector.load %arg5[%c0_10, %c0_11] : memref<1x1xf32, #tpu.memory_space<vmem>>, vector<1x1xf32>
    %16 = vector.broadcast %15 : vector<1x1xf32> to vector<8x8xf32>
    %17 = arith.addf %14, %16 : vector<8x8xf32>
    %18 = math.exp %17 : vector<8x8xf32>
    %cst_12 = arith.constant dense<0xFF800000> : vector<8xf32>
    %19 = vector.multi_reduction <maximumf>, %18, %cst_12 [1] : vector<8x8xf32> to vector<8xf32>
    %20 = vector.shape_cast %19 : vector<8xf32> to vector<8x1xf32>
    %21 = vector.broadcast %20 : vector<8x1xf32> to vector<8x8xf32>
    %22 = arith.subf %18, %21 : vector<8x8xf32>
    %23 = math.exp %22 : vector<8x8xf32>
    %cst_13 = arith.constant dense<0.000000e+00> : vector<8xf32>
    %24 = vector.multi_reduction <add>, %23, %cst_13 [1] : vector<8x8xf32> to vector<8xf32>
    %25 = vector.shape_cast %24 : vector<8xf32> to vector<8x1xf32>
    %26 = tpu.reciprocal %25 {approx = true} : vector<8x1xf32> -> vector<8x1xf32>
    %27 = arith.extf %0 : vector<8x8x128xbf16> to vector<8x8x128xf32>
    %28 = vector.shape_cast %23 : vector<8x8xf32> to vector<8x8x1xf32>
    %29 = vector.broadcast %28 : vector<8x8x1xf32> to vector<8x8x128xf32>
    %30 = arith.mulf %27, %29 : vector<8x8x128xf32>
    %cst_14 = arith.constant dense<0.000000e+00> : vector<8x128xf32>
    %31 = vector.multi_reduction <add>, %30, %cst_14 [1] : vector<8x8x128xf32> to vector<8x128xf32>
    %32 = vector.broadcast %26 : vector<8x1xf32> to vector<8x128xf32>
    %33 = arith.mulf %31, %32 : vector<8x128xf32>
    %c0_15 = arith.constant 0 : index
    %c0_16 = arith.constant 0 : index
    %34 = vector.load %arg6[%c0_15, %c0_16] : memref<8x128xf32, #tpu.memory_space<vmem>>, vector<8x128xf32>
    tpu.vector_store %arg6[%c0_15, %c0_16], %33 {strides = array<i32>} : memref<8x128xf32, #tpu.memory_space<vmem>>, vector<8x128xf32>,
    return
  }
  func.func @transform_0(%arg0: i32) -> (i32, i32, i32) {
    %c0_i32 = arith.constant 0 : i32
    %c0_i32_0 = arith.constant 0 : i32
    %c0_i32_1 = arith.constant 0 : i32
    return %arg0, %c0_i32, %c0_i32_0 : i32, i32, i32
  }
  func.func @transform_1(%arg0: i32) -> (i32, i32) {
    %c0_i32 = arith.constant 0 : i32
    %c0_i32_0 = arith.constant 0 : i32
    %c0_i32_1 = arith.constant 0 : i32
    return %c0_i32, %c0_i32_0 : i32, i32
  }
  func.func @transform_2(%arg0: i32) -> (i32, i32) {
    %c0_i32 = arith.constant 0 : i32
    %c0_i32_0 = arith.constant 0 : i32
    %c0_i32_1 = arith.constant 0 : i32
    return %c0_i32, %c0_i32_0 : i32, i32
  }
  func.func @transform_3(%arg0: i32) -> (i32, i32) {
    %c0_i32 = arith.constant 0 : i32
    %c0_i32_0 = arith.constant 0 : i32
    %c0_i32_1 = arith.constant 0 : i32
    return %c0_i32, %c0_i32_0 : i32, i32
  }
  func.func @transform_4(%arg0: i32) -> (i32, i32) {
    %c0_i32 = arith.constant 0 : i32
    %c0_i32_0 = arith.constant 0 : i32
    %c0_i32_1 = arith.constant 0 : i32
    return %c0_i32, %c0_i32_0 : i32, i32
  }
  func.func @transform_5(%arg0: i32) -> (i32, i32) {
    %c0_i32 = arith.constant 0 : i32
    %c0_i32_0 = arith.constant 0 : i32
    return %arg0, %c0_i32 : i32, i32
  }
}

</mosaic_0001>

<llo_original>
// kernel: tpu_custom_call.1
$region0: #{tpu_custom_call.1}
  #allocation0 [shape = 'u32[]', space=smem, size = 0x4, offset = 0x4, fixed_abs, tag = 'smem constant byte address 0x4 - core index']
  #allocation1 [shape = 'u32[144,128]{1,0:T(1,128)}', space=vmem, size = 0x12000, scoped, tag = 'internal scratch']
  #allocation2 [shape = 'f32[1,1]{1,0:T(1,128)S(1)}', space=vmem, size = 0x200, scoped, tag = 'scoped memory for tpu_custom_call.1']
  %s0 = inlined_call_operand.hbm [shape: bf16[16,8,128], index: 0, kind: input, shape index: {}]
  %s1 = inlined_call_operand.hbm [shape: bf16[128,128], index: 1, kind: input, shape index: {}]
  %s2 = inlined_call_operand.vmem [shape: f32[1,128], index: 2, kind: input, shape index: {}]
  %s3 = inlined_call_operand.vmem [shape: f32[1,128], index: 3, kind: input, shape index: {}]
  %s4 = inlined_call_operand.<no memory space> [shape: f32[1,1], index: 4, kind: input, shape index: {}]
  %s5 = inlined_call_operand.hbm [shape: f32[16,128], index: 5, kind: output, shape index: {}]
  %s6 = sld [smem:[#allocation0]]
  $region61: #{tpu_custom_call.1} parent=0
    _
  %s8 = ssub.s32 1, %s6
  %s9 = scalar_select 0, %s8, %s6
  %v10 = vstv %s4
  %11 = vst [vmem:[#allocation2] sm:$0x1] %v10
  $region1: #{tpu_custom_call.1} parent=0
    #allocation3 [shape = 'u8[32768]{0}', space=vmem, size = 0x8000, scoped, tag = 'input window, operand 0']
    #allocation4 [shape = 's32[2]{0}', space=sflag, size = 0x8, scoped, tag = 'scoped memory for tpu_custom_call.1']
    #allocation5 [shape = 's32[2]{0}', space=sflag, size = 0x8, scoped, tag = 'scoped memory for tpu_custom_call.1']
    #allocation6 [shape = 'u8[32768]{0}', space=vmem, size = 0x8000, scoped, tag = 'input window, operand 1, single buffered']
    #allocation7 [shape = 's32[1]{0}', space=sflag, size = 0x4, scoped, tag = 'scoped memory for tpu_custom_call.1']
    #allocation8 [shape = 'u8[8192]{0}', space=vmem, size = 0x2000, scoped, tag = 'output window, operand 0']
    %12 = vsyncpa [#allocation4], 0
    %s13 = scalar_lea.sflag [#allocation4], 1
    %14 = vsyncpa %s13, 0
    %15 = vsyncpa [#allocation7], 0
    %16 = vsyncpa [#allocation5], 0
    %s17 = scalar_lea.sflag [#allocation5], 1
    %18 = vsyncpa %s17, 0
    loop: start=0, step=1, limit=4
    $region2: #{tpu_custom_call.1} parent=1 // loop_pre_header
      _
    $region3: #{tpu_custom_call.1} parent=1 // loop_header
      %s20 = sphi 0, %s24
      %p21 = scmp.ge.s32.totalorder %s20, 4
      %s30 = sphi 0, %s32
      %s33 = sphi 0, %s30
      %s34 = sphi 0, %s33
      %s50 = sphi 0, %s34
      %s54 = sphi 0, %s54
      %s56 = sphi 0, %s54
      %s57 = sphi 0, %s56
      %s71 = sphi 0, %s57
      %s75 = sphi 0, %s75
      %s77 = sphi 0, %s75
      %s78 = sphi 0, %s77
      %s92 = sphi 0, %s78
      %s96 = sphi 0, %s96
      %s98 = sphi 0, %s96
      %s99 = sphi 0, %s98
      %s113 = sphi 0, %s99
      %s117 = sphi 0, %s117
      %s119 = sphi 0, %s117
      %s120 = sphi 0, %s119
      %s134 = sphi 0, %s120
      %s140 = sphi 0, %s142
      %s143 = sphi 0, %s140
      %s144 = sphi 0, %s143
      %s160 = sphi 0, %s144
    $region4: #{tpu_custom_call.1} parent=1 // loop_header_branch
      %23 = sbr.rel (%p21) target = $region8
    $region5: #{tpu_custom_call.1} parent=1 // loop_body
      %s25 = ssub.s32 %s20, 1
      %s26 = ssub.s32 %s20, 2
      %s27 = sadd.s32 %s20, 1
      %s28 = ssub.s32 %s20, %s27
      %p29 = scmp.eq.s32.totalorder %s28, 0
      %s31 = sadd.s32 %s30, 1
      %s32 = scalar_select %p29, %s30, %s31
      %p35 = pneg %p29
      %p36 = scmp.eq.s32.totalorder %s20, 1
      %p37 = por %p35, %p36
      %p38 = scmp.ne.s32.totalorder %s30, %s33
      %p39 = scmp.eq.s32.totalorder %s20, 0
      %p40 = por %p38, %p39
      %p41 = scmp.ne.s32.totalorder %s30, %s33
      %p42 = scmp.eq.s32.totalorder %s25, 1
      %p43 = por %p41, %p42
      %p44 = scmp.ne.s32.totalorder %s33, %s34
      %p45 = scmp.eq.s32.totalorder %s25, 0
      %p46 = por %p44, %p45
      %p47 = scmp.ne.s32.totalorder %s33, %s34
      %p48 = scmp.eq.s32.totalorder %s26, 1
      %p49 = por %p47, %p48
      %p51 = scmp.ne.s32.totalorder %s34, %s50
      %p52 = scmp.eq.s32.totalorder %s26, 0
      %p53 = por %p51, %p52
      %s55 = sadd.s32 %s54, 1
      %p58 = scmp.eq.s32.totalorder %s20, 1
      %p59 = scmp.ne.s32.totalorder %s54, %s56
      %p60 = scmp.eq.s32.totalorder %s20, 0
      %p61 = por %p59, %p60
      %p62 = scmp.ne.s32.totalorder %s54, %s56
      %p63 = scmp.eq.s32.totalorder %s25, 1
      %p64 = por %p62, %p63
      %p65 = scmp.ne.s32.totalorder %s56, %s57
      %p66 = scmp.eq.s32.totalorder %s25, 0
      %p67 = por %p65, %p66
      %p68 = scmp.ne.s32.totalorder %s56, %s57
      %p69 = scmp.eq.s32.totalorder %s26, 1
      %p70 = por %p68, %p69
      %p72 = scmp.ne.s32.totalorder %s57, %s71
      %p73 = scmp.eq.s32.totalorder %s26, 0
      %p74 = por %p72, %p73
      %s76 = sadd.s32 %s75, 1
      %p79 = scmp.eq.s32.totalorder %s20, 1
      %p80 = scmp.ne.s32.totalorder %s75, %s77
      %p81 = scmp.eq.s32.totalorder %s20, 0
      %p82 = por %p80, %p81
      %p83 = scmp.ne.s32.totalorder %s75, %s77
      %p84 = scmp.eq.s32.totalorder %s25, 1
      %p85 = por %p83, %p84
      %p86 = scmp.ne.s32.totalorder %s77, %s78
      %p87 = scmp.eq.s32.totalorder %s25, 0
      %p88 = por %p86, %p87
      %p89 = scmp.ne.s32.totalorder %s77, %s78
      %p90 = scmp.eq.s32.totalorder %s26, 1
      %p91 = por %p89, %p90
      %p93 = scmp.ne.s32.totalorder %s78, %s92
      %p94 = scmp.eq.s32.totalorder %s26, 0
      %p95 = por %p93, %p94
      %s97 = sadd.s32 %s96, 1
      %p100 = scmp.eq.s32.totalorder %s20, 1
      %p101 = scmp.ne.s32.totalorder %s96, %s98
      %p102 = scmp.eq.s32.totalorder %s20, 0
      %p103 = por %p101, %p102
      %p104 = scmp.ne.s32.totalorder %s96, %s98
      %p105 = scmp.eq.s32.totalorder %s25, 1
      %p106 = por %p104, %p105
      %p107 = scmp.ne.s32.totalorder %s98, %s99
      %p108 = scmp.eq.s32.totalorder %s25, 0
      %p109 = por %p107, %p108
      %p110 = scmp.ne.s32.totalorder %s98, %s99
      %p111 = scmp.eq.s32.totalorder %s26, 1
      %p112 = por %p110, %p111
      %p114 = scmp.ne.s32.totalorder %s99, %s113
      %p115 = scmp.eq.s32.totalorder %s26, 0
      %p116 = por %p114, %p115
      %s118 = sadd.s32 %s117, 1
      %p121 = scmp.eq.s32.totalorder %s20, 1
      %p122 = scmp.ne.s32.totalorder %s117, %s119
      %p123 = scmp.eq.s32.totalorder %s20, 0
      %p124 = por %p122, %p123
      %p125 = scmp.ne.s32.totalorder %s117, %s119
      %p126 = scmp.eq.s32.totalorder %s25, 1
      %p127 = por %p125, %p126
      %p128 = scmp.ne.s32.totalorder %s119, %s120
      %p129 = scmp.eq.s32.totalorder %s25, 0
      %p130 = por %p128, %p129
      %p131 = scmp.ne.s32.totalorder %s119, %s120
      %p132 = scmp.eq.s32.totalorder %s26, 1
      %p133 = por %p131, %p132
      %p135 = scmp.ne.s32.totalorder %s120, %s134
      %p136 = scmp.eq.s32.totalorder %s26, 0
      %p137 = por %p135, %p136
      %s138 = ssub.s32 %s20, %s27
      %p139 = scmp.eq.s32.totalorder %s138, 0
      %s141 = sadd.s32 %s140, 1
      %s142 = scalar_select %p139, %s140, %s141
      %p145 = pneg %p139
      %p146 = scmp.eq.s32.totalorder %s20, 1
      %p147 = por %p145, %p146
      %p148 = scmp.ne.s32.totalorder %s140, %s143
      %p149 = scmp.eq.s32.totalorder %s20, 0
      %p150 = por %p148, %p149
      %p151 = scmp.ne.s32.totalorder %s140, %s143
      %p152 = scmp.eq.s32.totalorder %s25, 1
      %p153 = por %p151, %p152
      %p154 = scmp.ne.s32.totalorder %s143, %s144
      %p155 = scmp.eq.s32.totalorder %s25, 0
      %p156 = por %p154, %p155
      %p157 = scmp.ne.s32.totalorder %s143, %s144
      %p158 = scmp.eq.s32.totalorder %s26, 1
      %p159 = por %p157, %p158
      %p161 = scmp.ne.s32.totalorder %s144, %s160
      %p162 = scmp.eq.s32.totalorder %s26, 0
      %p163 = por %p161, %p162
      %p164 = scmp.le.s32.totalorder 1, %s20
      %p165 = scmp.lt.s32.totalorder %s20, 3
      %p166 = pnand %p164, %p165
      %p167 = pneg %p166
      // Predicated region
      $region9: #{tpu_custom_call.1} parent=5 // pred_check
        _
      $region10: #{tpu_custom_call.1} parent=5 // pred_check_branch
        %169 = sbr.rel (%p166) target = $region12
      $region11: #{tpu_custom_call.1} parent=5 // pred_region
        %s170 = ssub.s32 %s20, 1
        // Predicated region
        $region13: #{tpu_custom_call.1} parent=11 // pred_check
          %p171 = pneg %p67
        $region14: #{tpu_custom_call.1} parent=11 // pred_check_branch
          %173 = sbr.rel (%p171) target = $region16
        $region15: #{tpu_custom_call.1} parent=11 // pred_region
          %s175 = ssub.s32 1024, 1024
          %176 = vsyncadd [#allocation7], %s175
          %s177 = sshll.u32 [#allocation6], 4
          %s178 = int_to_ptr.vmem [resolvable:$true] %s177
          %183 = dma.hbm_to_vmem [thread:$0]  %s1, 1024, %s178, [#allocation7], 64, 64, 4
        $region16: #{tpu_custom_call.1} parent=11 // pred_fallthru
          _
        // Predicated region
        $region17: #{tpu_custom_call.1} parent=11 // pred_check
          %p184 = pneg %p88
        $region18: #{tpu_custom_call.1} parent=11 // pred_check_branch
          %186 = sbr.rel (%p184) target = $region20
        $region19: #{tpu_custom_call.1} parent=11 // pred_region
          _
        $region20: #{tpu_custom_call.1} parent=11 // pred_fallthru
          _
        // Predicated region
        $region21: #{tpu_custom_call.1} parent=11 // pred_check
          %p187 = pneg %p109
        $region22: #{tpu_custom_call.1} parent=11 // pred_check_branch
          %189 = sbr.rel (%p187) target = $region24
        $region23: #{tpu_custom_call.1} parent=11 // pred_region
          _
        $region24: #{tpu_custom_call.1} parent=11 // pred_fallthru
          _
        // Predicated region
        $region25: #{tpu_custom_call.1} parent=11 // pred_check
          %p190 = pneg %p130
        $region26: #{tpu_custom_call.1} parent=11 // pred_check_branch
          %192 = sbr.rel (%p190) target = $region28
        $region27: #{tpu_custom_call.1} parent=11 // pred_region
          _
        $region28: #{tpu_custom_call.1} parent=11 // pred_fallthru
          _
      $region12: #{tpu_custom_call.1} parent=5 // pred_fallthru
        _
      %p193 = scmp.lt.s32.totalorder %s20, 2
      // Predicated region
      $region29: #{tpu_custom_call.1} parent=5 // pred_check
        %p194 = pneg %p193
      $region30: #{tpu_custom_call.1} parent=5 // pred_check_branch
        %196 = sbr.rel (%p194) target = $region32
      $region31: #{tpu_custom_call.1} parent=5 // pred_region
        // Predicated region
        $region33: #{tpu_custom_call.1} parent=31 // pred_check
          %p197 = pneg %p40
        $region34: #{tpu_custom_call.1} parent=31 // pred_check_branch
          %199 = sbr.rel (%p197) target = $region36
        $region35: #{tpu_custom_call.1} parent=31 // pred_region
          %s200 = sand.u32 %s30, 1
          %s201 = scalar_lea.sflag [#allocation4], %s200
          %s202 = sand.u32 %s30, 1
          %s203 = smul.addr %s202, 32
          %s204 = scalar_lea.vmem [#allocation3], %s203
          %s205 = smul.u32 8, %s20
          %s207 = ssub.s32 512, 512
          %208 = vsyncadd %s201, %s207
          %s209 = smul.addr %s205, 64
          %s210 = scalar_lea.hbm %s0, %s209
          %s211 = sshll.u32 %s204, 4
          %s212 = int_to_ptr.vmem [resolvable:$true] %s211
          %217 = dma.hbm_to_vmem [thread:$0]  %s210, 512, %s212, %s201, 64, 64, 4
        $region36: #{tpu_custom_call.1} parent=31 // pred_fallthru
          _
      $region32: #{tpu_custom_call.1} parent=5 // pred_fallthru
        _
      %p218 = scmp.le.s32.totalorder 1, %s20
      %p219 = scmp.lt.s32.totalorder %s20, 3
      %p220 = pnand %p218, %p219
      %p221 = pneg %p220
      // Predicated region
      $region37: #{tpu_custom_call.1} parent=5 // pred_check
        _
      $region38: #{tpu_custom_call.1} parent=5 // pred_check_branch
        %223 = sbr.rel (%p220) target = $region40
      $region39: #{tpu_custom_call.1} parent=5 // pred_region
        %s224 = ssub.s32 %s20, 1
        %s225 = sand.u32 %s33, 1
        %s226 = scalar_lea.sflag [#allocation4], %s225
        %s227 = sand.u32 %s33, 1
        %s228 = smul.addr %s227, 32
        %s229 = scalar_lea.vmem [#allocation3], %s228
        // Predicated region
        $region41: #{tpu_custom_call.1} parent=39 // pred_check
          %p230 = pneg %p46
        $region42: #{tpu_custom_call.1} parent=39 // pred_check_branch
          %232 = sbr.rel (%p230) target = $region44
        $region43: #{tpu_custom_call.1} parent=39 // pred_region
          %233 = dma.done %s226, 512
        $region44: #{tpu_custom_call.1} parent=39 // pred_fallthru
          _
        // Predicated region
        $region45: #{tpu_custom_call.1} parent=39 // pred_check
          %p234 = pneg %p67
        $region46: #{tpu_custom_call.1} parent=39 // pred_check_branch
          %236 = sbr.rel (%p234) target = $region48
        $region47: #{tpu_custom_call.1} parent=39 // pred_region
          %237 = dma.done [#allocation7], 1024
        $region48: #{tpu_custom_call.1} parent=39 // pred_fallthru
          _
        %s238 = sand.u32 %s33, 1
        %s239 = scalar_lea.sflag [#allocation4], %s238
        %s240 = sand.u32 %s33, 1
        %s241 = smul.addr %s240, 32
        %s242 = scalar_lea.vmem [#allocation3], %s241
        %p243 = pneg %p46
        %p244 = pneg %p43
        %p245 = pneg %p67
        %p246 = pneg %p64
        %p247 = pneg %p88
        %p248 = pneg %p85
        %p249 = pneg %p109
        %p250 = pneg %p106
        %p251 = pneg %p130
        %p252 = pneg %p127
        %p253 = pneg %p156
        %p254 = pneg %p153
        %s255 = sand.u32 %s143, 1
        %s256 = scalar_lea.sflag [#allocation5], %s255
        %s257 = sand.u32 %s143, 1
        %s258 = smul.addr %s257, 8
        %s259 = scalar_lea.vmem [#allocation8], %s258
        %s260 = smul.u32 8, %s25
        %v262 = vld [vmem:[%s229] sm:$0xf]
        %v263 = vld [vmem:[%s229 + $0x4] sm:$0xf]
        %v264 = vld [vmem:[%s229 + $0x8] sm:$0xf]
        %v265 = vld [vmem:[%s229 + $0xc] sm:$0xf]
        %v266 = vld [vmem:[%s229 + $0x10] sm:$0xf]
        %v267 = vld [vmem:[%s229 + $0x14] sm:$0xf]
        %v268 = vld [vmem:[%s229 + $0x18] sm:$0xf]
        %v269 = vld [vmem:[%s229 + $0x1c] sm:$0xf]
        %v270 = vld [vmem:[#allocation6] sm:$0xf]
        %v271 = vld [vmem:[#allocation6 + $0x4] sm:$0xf]
        %v272 = vld [vmem:[#allocation6 + $0x8] sm:$0xf]
        %v273 = vld [vmem:[#allocation6 + $0xc] sm:$0xf]
        %v274 = vld [vmem:[#allocation6 + $0x10] sm:$0xf]
        %v275 = vld [vmem:[#allocation6 + $0x14] sm:$0xf]
        %v276 = vld [vmem:[#allocation6 + $0x18] sm:$0xf]
        %v277 = vld [vmem:[#allocation6 + $0x1c] sm:$0xf]
        %v278 = vld [vmem:[#allocation6 + $0x20] sm:$0xf]
        %v279 = vld [vmem:[#allocation6 + $0x24] sm:$0xf]
        %v280 = vld [vmem:[#allocation6 + $0x28] sm:$0xf]
        %v281 = vld [vmem:[#allocation6 + $0x2c] sm:$0xf]
        %v282 = vld [vmem:[#allocation6 + $0x30] sm:$0xf]
        %v283 = vld [vmem:[#allocation6 + $0x34] sm:$0xf]
        %v284 = vld [vmem:[#allocation6 + $0x38] sm:$0xf]
        %v285 = vld [vmem:[#allocation6 + $0x3c] sm:$0xf]
        %v286 = vld [vmem:[%s2] sm:$0x1]
        %v288 = vlaneseq
        %v289 = vshrl.u32 %v288, 7
        %v290 = vsub.s32 0, %v289
        %v291 = vrot.slane %v286, %v290
        %v301 = vunpack.c.l.b16 %v262
        %v302 = vunpack.c.l.b16 %v263
        %v303 = vunpack.c.l.b16 %v264
        %v304 = vunpack.c.l.b16 %v265
        %v305 = vunpack.c.l.b16 %v266
        %v306 = vunpack.c.l.b16 %v267
        %v307 = vunpack.c.l.b16 %v268
        %v308 = vunpack.c.l.b16 %v269
        %v309 = vpack.c.b16 %v302, %v301
        %v310 = vpack.c.b16 %v304, %v303
        %v311 = vpack.c.b16 %v306, %v305
        %v312 = vpack.c.b16 %v308, %v307
        %v333 = vunpack.c.l.b16 %v270
        %v334 = vunpack.c.l.b16 %v271
        %v335 = vunpack.c.l.b16 %v272
        %v336 = vunpack.c.l.b16 %v273
        %v337 = vunpack.c.l.b16 %v274
        %v338 = vunpack.c.l.b16 %v275
        %v339 = vunpack.c.l.b16 %v276
        %v340 = vunpack.c.l.b16 %v277
        %v341 = vunpack.c.l.b16 %v278
        %v342 = vunpack.c.l.b16 %v279
        %v343 = vunpack.c.l.b16 %v280
        %v344 = vunpack.c.l.b16 %v281
        %v345 = vunpack.c.l.b16 %v282
        %v346 = vunpack.c.l.b16 %v283
        %v347 = vunpack.c.l.b16 %v284
        %v348 = vunpack.c.l.b16 %v285
        %v349 = vpack.c.b16 %v334, %v333
        %v350 = vpack.c.b16 %v336, %v335
        %v351 = vpack.c.b16 %v338, %v337
        %v352 = vpack.c.b16 %v340, %v339
        %v353 = vpack.c.b16 %v342, %v341
        %v354 = vpack.c.b16 %v344, %v343
        %v355 = vpack.c.b16 %v346, %v345
        %v356 = vpack.c.b16 %v348, %v347
        %365 = vmatprep.subr.bf16.mxu0 0
        %366 = vmatpush1.bf16.msra.mxu0 %v356
        %367 = vmatprep.subr.bf16.mxu0 0
        %368 = vmatpush1.bf16.msra.mxu0 %v355
        %369 = vmatprep.subr.bf16.mxu0 0
        %370 = vmatpush1.bf16.msra.mxu0 %v354
        %371 = vmatprep.subr.bf16.mxu0 0
        %372 = vmatpush1.bf16.msra.mxu0 %v353
        %373 = vmatprep.subr.bf16.mxu0 0
        %374 = vmatpush1.bf16.msra.mxu0 %v352
        %375 = vmatprep.subr.bf16.mxu0 0
        %376 = vmatpush1.bf16.msra.mxu0 %v351
        %377 = vmatprep.subr.bf16.mxu0 0
        %378 = vmatpush1.bf16.msra.mxu0 %v350
        %379 = vmatprep.subr.bf16.mxu0 0
        %380 = vmatpush1.bf16.msra.mxu0 %v349
        %381 = vmatprep.subr.bf16.mxu0 0
        %382 = vmatpush2.bf16.msra.mxu0 0
        %383 = vmatprep.subr.bf16.mxu0 0
        %384 = vmatpush2.bf16.msra.mxu0 0
        %385 = vmatprep.subr.bf16.mxu0 0
        %386 = vmatpush2.bf16.msra.mxu0 0
        %387 = vmatprep.subr.bf16.mxu0 0
        %388 = vmatpush2.bf16.msra.mxu0 0
        %389 = vmatprep.subr.bf16.mxu0 0
        %390 = vmatpush2.bf16.msra.mxu0 0
        %391 = vmatprep.subr.bf16.mxu0 0
        %392 = vmatpush2.bf16.msra.mxu0 0
        %393 = vmatprep.subr.bf16.mxu0 0
        %394 = vmatpush2.bf16.msra.mxu0 0
        %395 = vmatprep.subr.bf16.mxu0 0
        %396 = vmatpush2.bf16.msra.mxu0 0
        %397 = vmatprep.mubr.bf16.mxu0 0
        %398 = vmatmul.mubr.bf16.gmra.mxu0 %v309
        %v399 = vpop.f32.mrf.mxu0
        %v400 = vadd.f32 %v291, %v399
        %v401 = vpop.f32.mrf.mxu0
        %v402 = vpop.f32.mrf.mxu0
        %v403 = vadd.f32 %v291, %v402
        %v404 = vpop.f32.mrf.mxu0
        %405 = vmatprep.mubr.bf16.mxu0 0
        %406 = vmatmul.mubr.bf16.gmra.mxu0 %v310
        %v407 = vpop.f32.mrf.mxu0
        %v408 = vadd.f32 %v291, %v407
        %v409 = vpop.f32.mrf.mxu0
        %v410 = vpop.f32.mrf.mxu0
        %v411 = vadd.f32 %v291, %v410
        %v412 = vpop.f32.mrf.mxu0
        %413 = vmatprep.mubr.bf16.mxu0 0
        %414 = vmatmul.mubr.bf16.gmra.mxu0 %v311
        %v415 = vpop.f32.mrf.mxu0
        %v416 = vadd.f32 %v291, %v415
        %v417 = vpop.f32.mrf.mxu0
        %v418 = vpop.f32.mrf.mxu0
        %v419 = vadd.f32 %v291, %v418
        %v420 = vpop.f32.mrf.mxu0
        %421 = vmatprep.mubr.bf16.mxu0 0
        %422 = vmatmul.mubr.bf16.gmra.mxu0 %v312
        %v423 = vpop.f32.mrf.mxu0
        %v424 = vadd.f32 %v291, %v423
        %v425 = vpop.f32.mrf.mxu0
        %v426 = vpop.f32.mrf.mxu0
        %v427 = vadd.f32 %v291, %v426
        %v428 = vpop.f32.mrf.mxu0
        %429 = vdwg.mxu0
        %v430 = vmax.f32 %v400, 0.0
        %v431 = vmax.f32 %v403, 0.0
        %v432 = vmax.f32 %v408, 0.0
        %v433 = vmax.f32 %v411, 0.0
        %v434 = vmax.f32 %v416, 0.0
        %v435 = vmax.f32 %v419, 0.0
        %v436 = vmax.f32 %v424, 0.0
        %v437 = vmax.f32 %v427, 0.0
        %v438 = vld [vmem:[%s3] sm:$0x1]
        %v440 = vlaneseq
        %v441 = vshrl.u32 %v440, 7
        %v442 = vsub.s32 0, %v441
        %v443 = vrot.slane %v438, %v442
        %v445 = vmul.f32 %v430, %v443
        %v446 = vmul.f32 %v431, %v443
        %v447 = vmul.f32 %v432, %v443
        %v448 = vmul.f32 %v433, %v443
        %v449 = vmul.f32 %v434, %v443
        %v450 = vmul.f32 %v435, %v443
        %v451 = vmul.f32 %v436, %v443
        %v452 = vmul.f32 %v437, %v443
        %453 = vadd.xlane.f32.xlu0 %v445
        %v454 = vpop.xlane.xlu0 %453
        %455 = vadd.xlane.f32.xlu0 %v446
        %v456 = vpop.xlane.xlu0 %455
        %457 = vadd.xlane.f32.xlu0 %v447
        %v458 = vpop.xlane.xlu0 %457
        %459 = vadd.xlane.f32.xlu0 %v448
        %v460 = vpop.xlane.xlu0 %459
        %461 = vadd.xlane.f32.xlu0 %v449
        %v462 = vpop.xlane.xlu0 %461
        %463 = vadd.xlane.f32.xlu0 %v450
        %v464 = vpop.xlane.xlu0 %463
        %465 = vadd.xlane.f32.xlu0 %v451
        %v466 = vpop.xlane.xlu0 %465
        %467 = vadd.xlane.f32.xlu0 %v452
        %v468 = vpop.xlane.xlu0 %467
        %v469 = vld [vmem:[#allocation2] sm:$0x1]
        %v471 = vlaneseq
        %v472 = vshrl.u32 %v471, 7
        %v473 = vsub.s32 0, %v472
        %v474 = vrot.slane %v469, %v473
        %475 = vset.pattern.permute.xlu0 0
        %476 = vperm.xlu0 %475, %v474
        %v477 = vpop.permute.xlu0 %476
        %v479 = vadd.f32 %v454, %v477
        %v480 = vadd.f32 %v456, %v477
        %v481 = vadd.f32 %v458, %v477
        %v482 = vadd.f32 %v460, %v477
        %v483 = vadd.f32 %v462, %v477
        %v484 = vadd.f32 %v464, %v477
        %v485 = vadd.f32 %v466, %v477
        %v486 = vadd.f32 %v468, %v477
        %v487 = vmul.f32 %v479, 1.442695
        %v488 = vpow.pop %v487
        %v489 = vmul.f32 %v480, 1.442695
        %v490 = vpow.pop %v489
        %v491 = vmul.f32 %v481, 1.442695
        %v492 = vpow.pop %v491
        %v493 = vmul.f32 %v482, 1.442695
        %v494 = vpow.pop %v493
        %v495 = vmul.f32 %v483, 1.442695
        %v496 = vpow.pop %v495
        %v497 = vmul.f32 %v484, 1.442695
        %v498 = vpow.pop %v497
        %v499 = vmul.f32 %v485, 1.442695
        %v500 = vpow.pop %v499
        %v501 = vmul.f32 %v486, 1.442695
        %v502 = vpow.pop %v501
        %v511 = vlaneseq
        %v512 = vand.u32 %v511, 127
        %v513 = vlaneseq
        %v514 = vshrl.u32 %v513, 7
        %v515 = vsub.s32 %v512, %v514
        %v516 = vrot.slane %v488, %v515
        %v517 = vlaneseq
        %v518 = vshrl.u32 %v517, 7
        %v519 = vsub.s32 %v512, %v518
        %v520 = vrot.slane %v490, %v519
        %v521 = vlaneseq
        %v522 = vshrl.u32 %v521, 7
        %v523 = vsub.s32 %v512, %v522
        %v524 = vrot.slane %v492, %v523
        %v525 = vlaneseq
        %v526 = vshrl.u32 %v525, 7
        %v527 = vsub.s32 %v512, %v526
        %v528 = vrot.slane %v494, %v527
        %v529 = vlaneseq
        %v530 = vshrl.u32 %v529, 7
        %v531 = vsub.s32 %v512, %v530
        %v532 = vrot.slane %v496, %v531
        %v533 = vlaneseq
        %v534 = vshrl.u32 %v533, 7
        %v535 = vsub.s32 %v512, %v534
        %v536 = vrot.slane %v498, %v535
        %v537 = vlaneseq
        %v538 = vshrl.u32 %v537, 7
        %v539 = vsub.s32 %v512, %v538
        %v540 = vrot.slane %v500, %v539
        %v541 = vlaneseq
        %v542 = vshrl.u32 %v541, 7
        %v543 = vsub.s32 %v512, %v542
        %v544 = vrot.slane %v502, %v543
        %vm545 = vcmask 1041409
        %v546 = vsel %vm545, %v520, %v516
        %vm547 = vcmask 1042434
        %v548 = vsel %vm547, %v524, %v546
        %vm549 = vcmask 1043459
        %v550 = vsel %vm549, %v528, %v548
        %vm551 = vcmask 1044484
        %v552 = vsel %vm551, %v532, %v550
        %vm553 = vcmask 1045509
        %v554 = vsel %vm553, %v536, %v552
        %vm555 = vcmask 1046534
        %v556 = vsel %vm555, %v540, %v554
        %vm557 = vcmask 1047559
        %v558 = vsel %vm557, %v544, %v556
        %vm560 = vcmask 64512
        %v561 = vsel %vm560, %v558, -inf
        %562 = vmax.xlane.f32.xlu0 %v561
        %v563 = vpop.xlane.xlu0 %562
        %v565 = vlaneseq
        %v566 = vshrl.u32 %v565, 7
        %v567 = vsub.s32 0, %v566
        %v568 = vrot.slane %v563, %v567
        %v569 = vlaneseq
        %v570 = vshrl.u32 %v569, 7
        %v571 = vsub.s32 1, %v570
        %v572 = vrot.slane %v563, %v571
        %v573 = vlaneseq
        %v574 = vshrl.u32 %v573, 7
        %v575 = vsub.s32 2, %v574
        %v576 = vrot.slane %v563, %v575
        %v577 = vlaneseq
        %v578 = vshrl.u32 %v577, 7
        %v579 = vsub.s32 3, %v578
        %v580 = vrot.slane %v563, %v579
        %v581 = vlaneseq
        %v582 = vshrl.u32 %v581, 7
        %v583 = vsub.s32 4, %v582
        %v584 = vrot.slane %v563, %v583
        %v585 = vlaneseq
        %v586 = vshrl.u32 %v585, 7
        %v587 = vsub.s32 5, %v586
        %v588 = vrot.slane %v563, %v587
        %v589 = vlaneseq
        %v590 = vshrl.u32 %v589, 7
        %v591 = vsub.s32 6, %v590
        %v592 = vrot.slane %v563, %v591
        %v593 = vlaneseq
        %v594 = vshrl.u32 %v593, 7
        %v595 = vsub.s32 7, %v594
        %v596 = vrot.slane %v563, %v595
        %v605 = vsub.f32 %v488, %v568
        %v606 = vsub.f32 %v490, %v572
        %v607 = vsub.f32 %v492, %v576
        %v608 = vsub.f32 %v494, %v580
        %v609 = vsub.f32 %v496, %v584
        %v610 = vsub.f32 %v498, %v588
        %v611 = vsub.f32 %v500, %v592
        %v612 = vsub.f32 %v502, %v596
        %v613 = vmul.f32 %v605, 1.442695
        %v614 = vpow.pop %v613
        %v615 = vmul.f32 %v606, 1.442695
        %v616 = vpow.pop %v615
        %v617 = vmul.f32 %v607, 1.442695
        %v618 = vpow.pop %v617
        %v619 = vmul.f32 %v608, 1.442695
        %v620 = vpow.pop %v619
        %v621 = vmul.f32 %v609, 1.442695
        %v622 = vpow.pop %v621
        %v623 = vmul.f32 %v610, 1.442695
        %v624 = vpow.pop %v623
        %v625 = vmul.f32 %v611, 1.442695
        %v626 = vpow.pop %v625
        %v627 = vmul.f32 %v612, 1.442695
        %v628 = vpow.pop %v627
        %637 = vset.pattern.permute.xlu0 0
        %638 = vperm.xlu0 %637, %v614
        %v639 = vpop.permute.xlu0 %638
        %640 = vset.pattern.permute.xlu0 0
        %641 = vperm.xlu0 %640, %v616
        %v642 = vpop.permute.xlu0 %641
        %643 = vset.pattern.permute.xlu0 0
        %644 = vperm.xlu0 %643, %v618
        %v645 = vpop.permute.xlu0 %644
        %646 = vset.pattern.permute.xlu0 0
        %647 = vperm.xlu0 %646, %v620
        %v648 = vpop.permute.xlu0 %647
        %649 = vset.pattern.permute.xlu0 0
        %650 = vperm.xlu0 %649, %v622
        %v651 = vpop.permute.xlu0 %650
        %652 = vset.pattern.permute.xlu0 0
        %653 = vperm.xlu0 %652, %v624
        %v654 = vpop.permute.xlu0 %653
        %655 = vset.pattern.permute.xlu0 0
        %656 = vperm.xlu0 %655, %v626
        %v657 = vpop.permute.xlu0 %656
        %658 = vset.pattern.permute.xlu0 0
        %659 = vperm.xlu0 %658, %v628
        %v660 = vpop.permute.xlu0 %659
        %v661 = vlaneseq
        %v662 = vshrl.u32 %v661, 7
        %v663 = vsub.s32 %v512, %v662
        %v664 = vrot.slane %v639, %v663
        %v665 = vlaneseq
        %v666 = vshrl.u32 %v665, 7
        %v667 = vsub.s32 %v512, %v666
        %v668 = vrot.slane %v642, %v667
        %v669 = vlaneseq
        %v670 = vshrl.u32 %v669, 7
        %v671 = vsub.s32 %v512, %v670
        %v672 = vrot.slane %v645, %v671
        %v673 = vlaneseq
        %v674 = vshrl.u32 %v673, 7
        %v675 = vsub.s32 %v512, %v674
        %v676 = vrot.slane %v648, %v675
        %v677 = vlaneseq
        %v678 = vshrl.u32 %v677, 7
        %v679 = vsub.s32 %v512, %v678
        %v680 = vrot.slane %v651, %v679
        %v681 = vlaneseq
        %v682 = vshrl.u32 %v681, 7
        %v683 = vsub.s32 %v512, %v682
        %v684 = vrot.slane %v654, %v683
        %v685 = vlaneseq
        %v686 = vshrl.u32 %v685, 7
        %v687 = vsub.s32 %v512, %v686
        %v688 = vrot.slane %v657, %v687
        %v689 = vlaneseq
        %v690 = vshrl.u32 %v689, 7
        %v691 = vsub.s32 %v512, %v690
        %v692 = vrot.slane %v660, %v691
        %v693 = vsel %vm545, %v668, %v664
        %v694 = vsel %vm547, %v672, %v693
        %v695 = vsel %vm549, %v676, %v694
        %v696 = vsel %vm551, %v680, %v695
        %v697 = vsel %vm553, %v684, %v696
        %v698 = vsel %vm555, %v688, %v697
        %v699 = vsel %vm557, %v692, %v698
        %v701 = vsel %vm560, %v699, 0.0
        %702 = vadd.xlane.f32.xlu0 %v701
        %v703 = vpop.xlane.xlu0 %702
        %v704 = vrcp.pop %v703
        %v705 = vunpack.c.l.bf16 %v262
        %v706 = vunpack.c.l.bf16 %v263
        %v707 = vunpack.c.l.bf16 %v264
        %v708 = vunpack.c.l.bf16 %v265
        %v709 = vunpack.c.l.bf16 %v266
        %v710 = vunpack.c.l.bf16 %v267
        %v711 = vunpack.c.l.bf16 %v268
        %v712 = vunpack.c.l.bf16 %v269
        %v721 = vmul.f32 %v705, %v639
        %v722 = vmul.f32 %v706, %v642
        %v723 = vmul.f32 %v707, %v645
        %v724 = vmul.f32 %v708, %v648
        %v725 = vmul.f32 %v709, %v651
        %v726 = vmul.f32 %v710, %v654
        %v727 = vmul.f32 %v711, %v657
        %v728 = vmul.f32 %v712, %v660
        %v729 = vrot.slane %v721, 4
        %v730 = vadd.f32 %v721, %v729
        %v731 = vrot.slane %v730, 2
        %v732 = vadd.f32 %v730, %v731
        %v733 = vrot.slane %v732, 1
        %v734 = vadd.f32 %v732, %v733
        %v735 = vrot.slane %v722, 4
        %v736 = vadd.f32 %v722, %v735
        %v737 = vrot.slane %v736, 2
        %v738 = vadd.f32 %v736, %v737
        %v739 = vrot.slane %v738, 1
        %v740 = vadd.f32 %v738, %v739
        %v741 = vrot.slane %v723, 4
        %v742 = vadd.f32 %v723, %v741
        %v743 = vrot.slane %v742, 2
        %v744 = vadd.f32 %v742, %v743
        %v745 = vrot.slane %v744, 1
        %v746 = vadd.f32 %v744, %v745
        %v747 = vrot.slane %v724, 4
        %v748 = vadd.f32 %v724, %v747
        %v749 = vrot.slane %v748, 2
        %v750 = vadd.f32 %v748, %v749
        %v751 = vrot.slane %v750, 1
        %v752 = vadd.f32 %v750, %v751
        %v753 = vrot.slane %v725, 4
        %v754 = vadd.f32 %v725, %v753
        %v755 = vrot.slane %v754, 2
        %v756 = vadd.f32 %v754, %v755
        %v757 = vrot.slane %v756, 1
        %v758 = vadd.f32 %v756, %v757
        %v759 = vrot.slane %v726, 4
        %v760 = vadd.f32 %v726, %v759
        %v761 = vrot.slane %v760, 2
        %v762 = vadd.f32 %v760, %v761
        %v763 = vrot.slane %v762, 1
        %v764 = vadd.f32 %v762, %v763
        %v765 = vrot.slane %v727, 4
        %v766 = vadd.f32 %v727, %v765
        %v767 = vrot.slane %v766, 2
        %v768 = vadd.f32 %v766, %v767
        %v769 = vrot.slane %v768, 1
        %v770 = vadd.f32 %v768, %v769
        %v771 = vrot.slane %v728, 4
        %v772 = vadd.f32 %v728, %v771
        %v773 = vrot.slane %v772, 2
        %v774 = vadd.f32 %v772, %v773
        %v775 = vrot.slane %v774, 1
        %v776 = vadd.f32 %v774, %v775
        %v778 = vrot.slane %v704, 1
        %v779 = vrot.slane %v704, 2
        %v780 = vrot.slane %v704, 3
        %v781 = vrot.slane %v704, 4
        %v782 = vrot.slane %v704, 5
        %v783 = vrot.slane %v704, 6
        %v784 = vrot.slane %v704, 7
        %v793 = vmul.f32 %v734, %v704
        %v794 = vmul.f32 %v740, %v778
        %v795 = vmul.f32 %v746, %v779
        %v796 = vmul.f32 %v752, %v780
        %v797 = vmul.f32 %v758, %v781
        %v798 = vmul.f32 %v764, %v782
        %v799 = vmul.f32 %v770, %v783
        %v800 = vmul.f32 %v776, %v784
        %v809 = vrot.slane %v794, 7
        %v810 = vsel %vm545, %v809, %v793
        %v811 = vrot.slane %v795, 6
        %v812 = vsel %vm547, %v811, %v810
        %v813 = vrot.slane %v796, 5
        %v814 = vsel %vm549, %v813, %v812
        %v815 = vrot.slane %v797, 4
        %v816 = vsel %vm551, %v815, %v814
        %v817 = vrot.slane %v798, 3
        %v818 = vsel %vm553, %v817, %v816
        %v819 = vrot.slane %v799, 2
        %v820 = vsel %vm555, %v819, %v818
        %v821 = vrot.slane %v800, 1
        %v822 = vsel %vm557, %v821, %v820
        %824 = vst [vmem:[%s259] sm:$0xff] %v822
        %s825 = sand.u32 %s143, 1
        %s826 = scalar_lea.sflag [#allocation5], %s825
        %s827 = sand.u32 %s143, 1
        %s828 = smul.addr %s827, 8
        %s829 = scalar_lea.vmem [#allocation8], %s828
        // Predicated region
        $region49: #{tpu_custom_call.1} parent=39 // pred_check
          %p830 = pneg %p153
        $region50: #{tpu_custom_call.1} parent=39 // pred_check_branch
          %832 = sbr.rel (%p830) target = $region52
        $region51: #{tpu_custom_call.1} parent=39 // pred_region
          %s834 = ssub.s32 128, 128
          %835 = vsyncadd %s826, %s834
          %s836 = smul.addr %s25, 128
          %s837 = scalar_lea.hbm %s5, %s836
          %s839 = sshll.u32 %s829, 4
          %s840 = int_to_ptr.vmem [resolvable:$true] %s839
          %842 = dma.vmem_to_hbm [thread:$0]  %s840, 128, %s837, %s826
        $region52: #{tpu_custom_call.1} parent=39 // pred_fallthru
          _
      $region40: #{tpu_custom_call.1} parent=5 // pred_fallthru
        _
      %p843 = scmp.le.s32.totalorder 2, %s20
      // Predicated region
      $region53: #{tpu_custom_call.1} parent=5 // pred_check
        %p844 = pneg %p843
      $region54: #{tpu_custom_call.1} parent=5 // pred_check_branch
        %846 = sbr.rel (%p844) target = $region56
      $region55: #{tpu_custom_call.1} parent=5 // pred_region
        %s847 = ssub.s32 %s20, 2
        // Predicated region
        $region57: #{tpu_custom_call.1} parent=55 // pred_check
          %p848 = pneg %p159
        $region58: #{tpu_custom_call.1} parent=55 // pred_check_branch
          %850 = sbr.rel (%p848) target = $region60
        $region59: #{tpu_custom_call.1} parent=55 // pred_region
          %s851 = sand.u32 %s144, 1
          %s852 = scalar_lea.sflag [#allocation5], %s851
          %s853 = sand.u32 %s144, 1
          %s854 = smul.addr %s853, 8
          %s855 = scalar_lea.vmem [#allocation8], %s854
          %856 = dma.done %s852, 128
        $region60: #{tpu_custom_call.1} parent=55 // pred_fallthru
          _
      $region56: #{tpu_custom_call.1} parent=5 // pred_fallthru
        _
    $region6: #{tpu_custom_call.1} parent=1 // loop_footer
      %s24 = sadd.s32 1, %s20
    $region7: #{tpu_custom_call.1} parent=1 // loop_footer_branch
      %19 = sbr.rel target = $region3
    $region8: #{tpu_custom_call.1} parent=1 // loop_exit
      _
    %857 = vsyncpa [#allocation4], 1
    %s858 = scalar_lea.sflag [#allocation4], 1
    %859 = vsyncpa %s858, 1
    %860 = vsyncpa [#allocation7], 1
    %861 = vsyncpa [#allocation5], 1
    %s862 = scalar_lea.sflag [#allocation5], 1
    %863 = vsyncpa %s862, 1

// kernel: tpu_custom_call.1
$region0: #{tpu_custom_call.1}
  #allocation0 [shape = 'u32[]', space=smem, size = 0x4, offset = 0x4, fixed_abs, tag = 'smem constant byte address 0x4 - core index']
  #allocation1 [shape = 'u32[144,128]{1,0:T(1,128)}', space=vmem, size = 0x12000, scoped, tag = 'internal scratch']
  #allocation2 [shape = 'f32[1,1]{1,0:T(1,128)S(1)}', space=vmem, size = 0x200, scoped, tag = 'scoped memory for tpu_custom_call.1']
  %s0 = inlined_call_operand.hbm [shape: bf16[16,8,128], index: 0, kind: input, shape index: {}]
  %s1 = inlined_call_operand.hbm [shape: bf16[128,128], index: 1, kind: input, shape index: {}]
  %s2 = inlined_call_operand.vmem [shape: f32[1,128], index: 2, kind: input, shape index: {}]
  %s3 = inlined_call_operand.vmem [shape: f32[1,128], index: 3, kind: input, shape index: {}]
  %s4 = inlined_call_operand.<no memory space> [shape: f32[1,1], index: 4, kind: input, shape index: {}]
  %s5 = inlined_call_operand.hbm [shape: f32[16,128], index: 5, kind: output, shape index: {}]
  %s6 = sld [smem:[#allocation0]]
  $region61: #{tpu_custom_call.1} parent=0
    _
  %s8 = ssub.s32 1, %s6
  %s9 = scalar_select 0, %s8, %s6
  %v10 = vstv %s4
  %11 = vst [vmem:[#allocation2] sm:$0x1] %v10
  $region1: #{tpu_custom_call.1} parent=0
    #allocation3 [shape = 'u8[32768]{0}', space=vmem, size = 0x8000, scoped, tag = 'input window, operand 0']
    #allocation4 [shape = 's32[2]{0}', space=sflag, size = 0x8, scoped, tag = 'scoped memory for tpu_custom_call.1']
    #allocation5 [shape = 's32[2]{0}', space=sflag, size = 0x8, scoped, tag = 'scoped memory for tpu_custom_call.1']
    #allocation6 [shape = 'u8[32768]{0}', space=vmem, size = 0x8000, scoped, tag = 'input window, operand 1, single buffered']
    #allocation7 [shape = 's32[1]{0}', space=sflag, size = 0x4, scoped, tag = 'scoped memory for tpu_custom_call.1']
    #allocation8 [shape = 'u8[8192]{0}', space=vmem, size = 0x2000, scoped, tag = 'output window, operand 0']
    %12 = vsyncpa [#allocation4], 0
    %s13 = scalar_lea.sflag [#allocation4], 1
    %14 = vsyncpa %s13, 0
    %15 = vsyncpa [#allocation7], 0
    %16 = vsyncpa [#allocation5], 0
    %s17 = scalar_lea.sflag [#allocation5], 1
    %18 = vsyncpa %s17, 0
    loop: start=0, step=1, limit=4
    $region2: #{tpu_custom_call.1} parent=1 // loop_pre_header
      _
    $region3: #{tpu_custom_call.1} parent=1 // loop_header
      %s20 = sphi 0, %s24
      %p21 = scmp.ge.s32.totalorder %s20, 4
      %s30 = sphi 0, %s32
      %s33 = sphi 0, %s30
      %s34 = sphi 0, %s33
      %s50 = sphi 0, %s34
      %s54 = sphi 0, %s54
      %s56 = sphi 0, %s54
      %s57 = sphi 0, %s56
      %s71 = sphi 0, %s57
      %s75 = sphi 0, %s75
      %s77 = sphi 0, %s75
      %s78 = sphi 0, %s77
      %s92 = sphi 0, %s78
      %s96 = sphi 0, %s96
      %s98 = sphi 0, %s96
      %s99 = sphi 0, %s98
      %s113 = sphi 0, %s99
      %s117 = sphi 0, %s117
      %s119 = sphi 0, %s117
      %s120 = sphi 0, %s119
      %s134 = sphi 0, %s120
      %s140 = sphi 0, %s142
      %s143 = sphi 0, %s140
      %s144 = sphi 0, %s143
      %s160 = sphi 0, %s144
    $region4: #{tpu_custom_call.1} parent=1 // loop_header_branch
      %23 = sbr.rel (%p21) target = $region8
    $region5: #{tpu_custom_call.1} parent=1 // loop_body
      %s25 = ssub.s32 %s20, 1
      %s26 = ssub.s32 %s20, 2
      %s27 = sadd.s32 %s20, 1
      %s28 = ssub.s32 %s20, %s27
      %p29 = scmp.eq.s32.totalorder %s28, 0
      %s31 = sadd.s32 %s30, 1
      %s32 = scalar_select %p29, %s30, %s31
      %p35 = pneg %p29
      %p36 = scmp.eq.s32.totalorder %s20, 1
      %p37 = por %p35, %p36
      %p38 = scmp.ne.s32.totalorder %s30, %s33
      %p39 = scmp.eq.s32.totalorder %s20, 0
      %p40 = por %p38, %p39
      %p41 = scmp.ne.s32.totalorder %s30, %s33
      %p42 = scmp.eq.s32.totalorder %s25, 1
      %p43 = por %p41, %p42
      %p44 = scmp.ne.s32.totalorder %s33, %s34
      %p45 = scmp.eq.s32.totalorder %s25, 0
      %p46 = por %p44, %p45
      %p47 = scmp.ne.s32.totalorder %s33, %s34
      %p48 = scmp.eq.s32.totalorder %s26, 1
      %p49 = por %p47, %p48
      %p51 = scmp.ne.s32.totalorder %s34, %s50
      %p52 = scmp.eq.s32.totalorder %s26, 0
      %p53 = por %p51, %p52
      %s55 = sadd.s32 %s54, 1
      %p58 = scmp.eq.s32.totalorder %s20, 1
      %p59 = scmp.ne.s32.totalorder %s54, %s56
      %p60 = scmp.eq.s32.totalorder %s20, 0
      %p61 = por %p59, %p60
      %p62 = scmp.ne.s32.totalorder %s54, %s56
      %p63 = scmp.eq.s32.totalorder %s25, 1
      %p64 = por %p62, %p63
      %p65 = scmp.ne.s32.totalorder %s56, %s57
      %p66 = scmp.eq.s32.totalorder %s25, 0
      %p67 = por %p65, %p66
      %p68 = scmp.ne.s32.totalorder %s56, %s57
      %p69 = scmp.eq.s32.totalorder %s26, 1
      %p70 = por %p68, %p69
      %p72 = scmp.ne.s32.totalorder %s57, %s71
      %p73 = scmp.eq.s32.totalorder %s26, 0
      %p74 = por %p72, %p73
      %s76 = sadd.s32 %s75, 1
      %p79 = scmp.eq.s32.totalorder %s20, 1
      %p80 = scmp.ne.s32.totalorder %s75, %s77
      %p81 = scmp.eq.s32.totalorder %s20, 0
      %p82 = por %p80, %p81
      %p83 = scmp.ne.s32.totalorder %s75, %s77
      %p84 = scmp.eq.s32.totalorder %s25, 1
      %p85 = por %p83, %p84
      %p86 = scmp.ne.s32.totalorder %s77, %s78
      %p87 = scmp.eq.s32.totalorder %s25, 0
      %p88 = por %p86, %p87
      %p89 = scmp.ne.s32.totalorder %s77, %s78
      %p90 = scmp.eq.s32.totalorder %s26, 1
      %p91 = por %p89, %p90
      %p93 = scmp.ne.s32.totalorder %s78, %s92
      %p94 = scmp.eq.s32.totalorder %s26, 0
      %p95 = por %p93, %p94
      %s97 = sadd.s32 %s96, 1
      %p100 = scmp.eq.s32.totalorder %s20, 1
      %p101 = scmp.ne.s32.totalorder %s96, %s98
      %p102 = scmp.eq.s32.totalorder %s20, 0
      %p103 = por %p101, %p102
      %p104 = scmp.ne.s32.totalorder %s96, %s98
      %p105 = scmp.eq.s32.totalorder %s25, 1
      %p106 = por %p104, %p105
      %p107 = scmp.ne.s32.totalorder %s98, %s99
      %p108 = scmp.eq.s32.totalorder %s25, 0
      %p109 = por %p107, %p108
      %p110 = scmp.ne.s32.totalorder %s98, %s99
      %p111 = scmp.eq.s32.totalorder %s26, 1
      %p112 = por %p110, %p111
      %p114 = scmp.ne.s32.totalorder %s99, %s113
      %p115 = scmp.eq.s32.totalorder %s26, 0
      %p116 = por %p114, %p115
      %s118 = sadd.s32 %s117, 1
      %p121 = scmp.eq.s32.totalorder %s20, 1
      %p122 = scmp.ne.s32.totalorder %s117, %s119
      %p123 = scmp.eq.s32.totalorder %s20, 0
      %p124 = por %p122, %p123
      %p125 = scmp.ne.s32.totalorder %s117, %s119
      %p126 = scmp.eq.s32.totalorder %s25, 1
      %p127 = por %p125, %p126
      %p128 = scmp.ne.s32.totalorder %s119, %s120
      %p129 = scmp.eq.s32.totalorder %s25, 0
      %p130 = por %p128, %p129
      %p131 = scmp.ne.s32.totalorder %s119, %s120
      %p132 = scmp.eq.s32.totalorder %s26, 1
      %p133 = por %p131, %p132
      %p135 = scmp.ne.s32.totalorder %s120, %s134
      %p136 = scmp.eq.s32.totalorder %s26, 0
      %p137 = por %p135, %p136
      %s138 = ssub.s32 %s20, %s27
      %p139 = scmp.eq.s32.totalorder %s138, 0
      %s141 = sadd.s32 %s140, 1
      %s142 = scalar_select %p139, %s140, %s141
      %p145 = pneg %p139
      %p146 = scmp.eq.s32.totalorder %s20, 1
      %p147 = por %p145, %p146
      %p148 = scmp.ne.s32.totalorder %s140, %s143
      %p149 = scmp.eq.s32.totalorder %s20, 0
      %p150 = por %p148, %p149
      %p151 = scmp.ne.s32.totalorder %s140, %s143
      %p152 = scmp.eq.s32.totalorder %s25, 1
      %p153 = por %p151, %p152
      %p154 = scmp.ne.s32.totalorder %s143, %s144
      %p155 = scmp.eq.s32.totalorder %s25, 0
      %p156 = por %p154, %p155
      %p157 = scmp.ne.s32.totalorder %s143, %s144
      %p158 = scmp.eq.s32.totalorder %s26, 1
      %p159 = por %p157, %p158
      %p161 = scmp.ne.s32.totalorder %s144, %s160
      %p162 = scmp.eq.s32.totalorder %s26, 0
      %p163 = por %p161, %p162
      %p164 = scmp.le.s32.totalorder 1, %s20
      %p165 = scmp.lt.s32.totalorder %s20, 3
      %p166 = pnand %p164, %p165
      %p167 = pneg %p166
      // Predicated region
      $region9: #{tpu_custom_call.1} parent=5 // pred_check
        _
      $region10: #{tpu_custom_call.1} parent=5 // pred_check_branch
        %169 = sbr.rel (%p166) target = $region12
      $region11: #{tpu_custom_call.1} parent=5 // pred_region
        %s170 = ssub.s32 %s20, 1
        // Predicated region
        $region13: #{tpu_custom_call.1} parent=11 // pred_check
          %p171 = pneg %p67
        $region14: #{tpu_custom_call.1} parent=11 // pred_check_branch
          %173 = sbr.rel (%p171) target = $region16
        $region15: #{tpu_custom_call.1} parent=11 // pred_region
          %s175 = ssub.s32 1024, 1024
          %176 = vsyncadd [#allocation7], %s175
          %s177 = sshll.u32 [#allocation6], 4
          %s178 = int_to_ptr.vmem [resolvable:$true] %s177
          %183 = dma.hbm_to_vmem [thread:$0]  %s1, 1024, %s178, [#allocation7], 64, 64, 4
        $region16: #{tpu_custom_call.1} parent=11 // pred_fallthru
          _
        // Predicated region
        $region17: #{tpu_custom_call.1} parent=11 // pred_check
          %p184 = pneg %p88
        $region18: #{tpu_custom_call.1} parent=11 // pred_check_branch
          %186 = sbr.rel (%p184) target = $region20
        $region19: #{tpu_custom_call.1} parent=11 // pred_region
          _
        $region20: #{tpu_custom_call.1} parent=11 // pred_fallthru
          _
        // Predicated region
        $region21: #{tpu_custom_call.1} parent=11 // pred_check
          %p187 = pneg %p109
        $region22: #{tpu_custom_call.1} parent=11 // pred_check_branch
          %189 = sbr.rel (%p187) target = $region24
        $region23: #{tpu_custom_call.1} parent=11 // pred_region
          _
        $region24: #{tpu_custom_call.1} parent=11 // pred_fallthru
          _
        // Predicated region
        $region25: #{tpu_custom_call.1} parent=11 // pred_check
          %p190 = pneg %p130
        $region26: #{tpu_custom_call.1} parent=11 // pred_check_branch
          %192 = sbr.rel (%p190) target = $region28
        $region27: #{tpu_custom_call.1} parent=11 // pred_region
          _
        $region28: #{tpu_custom_call.1} parent=11 // pred_fallthru
          _
      $region12: #{tpu_custom_call.1} parent=5 // pred_fallthru
        _
      %p193 = scmp.lt.s32.totalorder %s20, 2
      // Predicated region
      $region29: #{tpu_custom_call.1} parent=5 // pred_check
        %p194 = pneg %p193
      $region30: #{tpu_custom_call.1} parent=5 // pred_check_branch
        %196 = sbr.rel (%p194) target = $region32
      $region31: #{tpu_custom_call.1} parent=5 // pred_region
        // Predicated region
        $region33: #{tpu_custom_call.1} parent=31 // pred_check
          %p197 = pneg %p40
        $region34: #{tpu_custom_call.1} parent=31 // pred_check_branch
          %199 = sbr.rel (%p197) target = $region36
        $region35: #{tpu_custom_call.1} parent=31 // pred_region
          %s200 = sand.u32 %s30, 1
          %s201 = scalar_lea.sflag [#allocation4], %s200
          %s202 = sand.u32 %s30, 1
          %s203 = smul.addr %s202, 32
          %s204 = scalar_lea.vmem [#allocation3], %s203
          %s205 = smul.u32 8, %s20
          %s207 = ssub.s32 512, 512
          %208 = vsyncadd %s201, %s207
          %s209 = smul.addr %s205, 64
          %s210 = scalar_lea.hbm %s0, %s209
          %s211 = sshll.u32 %s204, 4
          %s212 = int_to_ptr.vmem [resolvable:$true] %s211
          %217 = dma.hbm_to_vmem [thread:$0]  %s210, 512, %s212, %s201, 64, 64, 4
        $region36: #{tpu_custom_call.1} parent=31 // pred_fallthru
          _
      $region32: #{tpu_custom_call.1} parent=5 // pred_fallthru
        _
      %p218 = scmp.le.s32.totalorder 1, %s20
      %p219 = scmp.lt.s32.totalorder %s20, 3
      %p220 = pnand %p218, %p219
      %p221 = pneg %p220
      // Predicated region
      $region37: #{tpu_custom_call.1} parent=5 // pred_check
        _
      $region38: #{tpu_custom_call.1} parent=5 // pred_check_branch
        %223 = sbr.rel (%p220) target = $region40
      $region39: #{tpu_custom_call.1} parent=5 // pred_region
        %s224 = ssub.s32 %s20, 1
        %s225 = sand.u32 %s33, 1
        %s226 = scalar_lea.sflag [#allocation4], %s225
        %s227 = sand.u32 %s33, 1
        %s228 = smul.addr %s227, 32
        %s229 = scalar_lea.vmem [#allocation3], %s228
        // Predicated region
        $region41: #{tpu_custom_call.1} parent=39 // pred_check
          %p230 = pneg %p46
        $region42: #{tpu_custom_call.1} parent=39 // pred_check_branch
          %232 = sbr.rel (%p230) target = $region44
        $region43: #{tpu_custom_call.1} parent=39 // pred_region
          %233 = dma.done %s226, 512
        $region44: #{tpu_custom_call.1} parent=39 // pred_fallthru
          _
        // Predicated region
        $region45: #{tpu_custom_call.1} parent=39 // pred_check
          %p234 = pneg %p67
        $region46: #{tpu_custom_call.1} parent=39 // pred_check_branch
          %236 = sbr.rel (%p234) target = $region48
        $region47: #{tpu_custom_call.1} parent=39 // pred_region
          %237 = dma.done [#allocation7], 1024
        $region48: #{tpu_custom_call.1} parent=39 // pred_fallthru
          _
        %s238 = sand.u32 %s33, 1
        %s239 = scalar_lea.sflag [#allocation4], %s238
        %s240 = sand.u32 %s33, 1
        %s241 = smul.addr %s240, 32
        %s242 = scalar_lea.vmem [#allocation3], %s241
        %p243 = pneg %p46
        %p244 = pneg %p43
        %p245 = pneg %p67
        %p246 = pneg %p64
        %p247 = pneg %p88
        %p248 = pneg %p85
        %p249 = pneg %p109
        %p250 = pneg %p106
        %p251 = pneg %p130
        %p252 = pneg %p127
        %p253 = pneg %p156
        %p254 = pneg %p153
        %s255 = sand.u32 %s143, 1
        %s256 = scalar_lea.sflag [#allocation5], %s255
        %s257 = sand.u32 %s143, 1
        %s258 = smul.addr %s257, 8
        %s259 = scalar_lea.vmem [#allocation8], %s258
        %s260 = smul.u32 8, %s25
        %v262 = vld [vmem:[%s229] sm:$0xf]
        %v263 = vld [vmem:[%s229 + $0x4] sm:$0xf]
        %v264 = vld [vmem:[%s229 + $0x8] sm:$0xf]
        %v265 = vld [vmem:[%s229 + $0xc] sm:$0xf]
        %v266 = vld [vmem:[%s229 + $0x10] sm:$0xf]
        %v267 = vld [vmem:[%s229 + $0x14] sm:$0xf]
        %v268 = vld [vmem:[%s229 + $0x18] sm:$0xf]
        %v269 = vld [vmem:[%s229 + $0x1c] sm:$0xf]
        %v270 = vld [vmem:[#allocation6] sm:$0xf]
        %v271 = vld [vmem:[#allocation6 + $0x4] sm:$0xf]
        %v272 = vld [vmem:[#allocation6 + $0x8] sm:$0xf]
        %v273 = vld [vmem:[#allocation6 + $0xc] sm:$0xf]
        %v274 = vld [vmem:[#allocation6 + $0x10] sm:$0xf]
        %v275 = vld [vmem:[#allocation6 + $0x14] sm:$0xf]
        %v276 = vld [vmem:[#allocation6 + $0x18] sm:$0xf]
        %v277 = vld [vmem:[#allocation6 + $0x1c] sm:$0xf]
        %v278 = vld [vmem:[#allocation6 + $0x20] sm:$0xf]
        %v279 = vld [vmem:[#allocation6 + $0x24] sm:$0xf]
        %v280 = vld [vmem:[#allocation6 + $0x28] sm:$0xf]
        %v281 = vld [vmem:[#allocation6 + $0x2c] sm:$0xf]
        %v282 = vld [vmem:[#allocation6 + $0x30] sm:$0xf]
        %v283 = vld [vmem:[#allocation6 + $0x34] sm:$0xf]
        %v284 = vld [vmem:[#allocation6 + $0x38] sm:$0xf]
        %v285 = vld [vmem:[#allocation6 + $0x3c] sm:$0xf]
        %v286 = vld [vmem:[%s2] sm:$0x1]
        %v288 = vlaneseq
        %v289 = vshrl.u32 %v288, 7
        %v290 = vsub.s32 0, %v289
        %v291 = vrot.slane %v286, %v290
        %v301 = vunpack.c.l.b16 %v262
        %v302 = vunpack.c.l.b16 %v263
        %v303 = vunpack.c.l.b16 %v264
        %v304 = vunpack.c.l.b16 %v265
        %v305 = vunpack.c.l.b16 %v266
        %v306 = vunpack.c.l.b16 %v267
        %v307 = vunpack.c.l.b16 %v268
        %v308 = vunpack.c.l.b16 %v269
        %v309 = vpack.c.b16 %v302, %v301
        %v310 = vpack.c.b16 %v304, %v303
        %v311 = vpack.c.b16 %v306, %v305
        %v312 = vpack.c.b16 %v308, %v307
        %v333 = vunpack.c.l.b16 %v270
        %v334 = vunpack.c.l.b16 %v271
        %v335 = vunpack.c.l.b16 %v272
        %v336 = vunpack.c.l.b16 %v273
        %v337 = vunpack.c.l.b16 %v274
        %v338 = vunpack.c.l.b16 %v275
        %v339 = vunpack.c.l.b16 %v276
        %v340 = vunpack.c.l.b16 %v277
        %v341 = vunpack.c.l.b16 %v278
        %v342 = vunpack.c.l.b16 %v279
        %v343 = vunpack.c.l.b16 %v280
        %v344 = vunpack.c.l.b16 %v281
        %v345 = vunpack.c.l.b16 %v282
        %v346 = vunpack.c.l.b16 %v283
        %v347 = vunpack.c.l.b16 %v284
        %v348 = vunpack.c.l.b16 %v285
        %v349 = vpack.c.b16 %v334, %v333
        %v350 = vpack.c.b16 %v336, %v335
        %v351 = vpack.c.b16 %v338, %v337
        %v352 = vpack.c.b16 %v340, %v339
        %v353 = vpack.c.b16 %v342, %v341
        %v354 = vpack.c.b16 %v344, %v343
        %v355 = vpack.c.b16 %v346, %v345
        %v356 = vpack.c.b16 %v348, %v347
        %365 = vmatprep.subr.bf16.mxu0 0
        %366 = vmatpush1.bf16.msra.mxu0 %v356
        %367 = vmatprep.subr.bf16.mxu0 0
        %368 = vmatpush1.bf16.msra.mxu0 %v355
        %369 = vmatprep.subr.bf16.mxu0 0
        %370 = vmatpush1.bf16.msra.mxu0 %v354
        %371 = vmatprep.subr.bf16.mxu0 0
        %372 = vmatpush1.bf16.msra.mxu0 %v353
        %373 = vmatprep.subr.bf16.mxu0 0
        %374 = vmatpush1.bf16.msra.mxu0 %v352
        %375 = vmatprep.subr.bf16.mxu0 0
        %376 = vmatpush1.bf16.msra.mxu0 %v351
        %377 = vmatprep.subr.bf16.mxu0 0
        %378 = vmatpush1.bf16.msra.mxu0 %v350
        %379 = vmatprep.subr.bf16.mxu0 0
        %380 = vmatpush1.bf16.msra.mxu0 %v349
        %381 = vmatprep.subr.bf16.mxu0 0
        %382 = vmatpush2.bf16.msra.mxu0 0
        %383 = vmatprep.subr.bf16.mxu0 0
        %384 = vmatpush2.bf16.msra.mxu0 0
        %385 = vmatprep.subr.bf16.mxu0 0
        %386 = vmatpush2.bf16.msra.mxu0 0
        %387 = vmatprep.subr.bf16.mxu0 0
        %388 = vmatpush2.bf16.msra.mxu0 0
        %389 = vmatprep.subr.bf16.mxu0 0
        %390 = vmatpush2.bf16.msra.mxu0 0
        %391 = vmatprep.subr.bf16.mxu0 0
        %392 = vmatpush2.bf16.msra.mxu0 0
        %393 = vmatprep.subr.bf16.mxu0 0
        %394 = vmatpush2.bf16.msra.mxu0 0
        %395 = vmatprep.subr.bf16.mxu0 0
        %396 = vmatpush2.bf16.msra.mxu0 0
        %397 = vmatprep.mubr.bf16.mxu0 0
        %398 = vmatmul.mubr.bf16.gmra.mxu0 %v309
        %v399 = vpop.f32.mrf.mxu0
        %v400 = vadd.f32 %v291, %v399
        %v401 = vpop.f32.mrf.mxu0
        %v402 = vpop.f32.mrf.mxu0
        %v403 = vadd.f32 %v291, %v402
        %v404 = vpop.f32.mrf.mxu0
        %405 = vmatprep.mubr.bf16.mxu0 0
        %406 = vmatmul.mubr.bf16.gmra.mxu0 %v310
        %v407 = vpop.f32.mrf.mxu0
        %v408 = vadd.f32 %v291, %v407
        %v409 = vpop.f32.mrf.mxu0
        %v410 = vpop.f32.mrf.mxu0
        %v411 = vadd.f32 %v291, %v410
        %v412 = vpop.f32.mrf.mxu0
        %413 = vmatprep.mubr.bf16.mxu0 0
        %414 = vmatmul.mubr.bf16.gmra.mxu0 %v311
        %v415 = vpop.f32.mrf.mxu0
        %v416 = vadd.f32 %v291, %v415
        %v417 = vpop.f32.mrf.mxu0
        %v418 = vpop.f32.mrf.mxu0
        %v419 = vadd.f32 %v291, %v418
        %v420 = vpop.f32.mrf.mxu0
        %421 = vmatprep.mubr.bf16.mxu0 0
        %422 = vmatmul.mubr.bf16.gmra.mxu0 %v312
        %v423 = vpop.f32.mrf.mxu0
        %v424 = vadd.f32 %v291, %v423
        %v425 = vpop.f32.mrf.mxu0
        %v426 = vpop.f32.mrf.mxu0
        %v427 = vadd.f32 %v291, %v426
        %v428 = vpop.f32.mrf.mxu0
        %429 = vdwg.mxu0
        %v430 = vmax.f32 %v400, 0.0
        %v431 = vmax.f32 %v403, 0.0
        %v432 = vmax.f32 %v408, 0.0
        %v433 = vmax.f32 %v411, 0.0
        %v434 = vmax.f32 %v416, 0.0
        %v435 = vmax.f32 %v419, 0.0
        %v436 = vmax.f32 %v424, 0.0
        %v437 = vmax.f32 %v427, 0.0
        %v438 = vld [vmem:[%s3] sm:$0x1]
        %v440 = vlaneseq
        %v441 = vshrl.u32 %v440, 7
        %v442 = vsub.s32 0, %v441
        %v443 = vrot.slane %v438, %v442
        %v445 = vmul.f32 %v430, %v443
        %v446 = vmul.f32 %v431, %v443
        %v447 = vmul.f32 %v432, %v443
        %v448 = vmul.f32 %v433, %v443
        %v449 = vmul.f32 %v434, %v443
        %v450 = vmul.f32 %v435, %v443
        %v451 = vmul.f32 %v436, %v443
        %v452 = vmul.f32 %v437, %v443
        %453 = vadd.xlane.f32.xlu0 %v445
        %v454 = vpop.xlane.xlu0 %453
        %455 = vadd.xlane.f32.xlu0 %v446
        %v456 = vpop.xlane.xlu0 %455
        %457 = vadd.xlane.f32.xlu0 %v447
        %v458 = vpop.xlane.xlu0 %457
        %459 = vadd.xlane.f32.xlu0 %v448
        %v460 = vpop.xlane.xlu0 %459
        %461 = vadd.xlane.f32.xlu0 %v449
        %v462 = vpop.xlane.xlu0 %461
        %463 = vadd.xlane.f32.xlu0 %v450
        %v464 = vpop.xlane.xlu0 %463
        %465 = vadd.xlane.f32.xlu0 %v451
        %v466 = vpop.xlane.xlu0 %465
        %467 = vadd.xlane.f32.xlu0 %v452
        %v468 = vpop.xlane.xlu0 %467
        %v469 = vld [vmem:[#allocation2] sm:$0x1]
        %v471 = vlaneseq
        %v472 = vshrl.u32 %v471, 7
        %v473 = vsub.s32 0, %v472
        %v474 = vrot.slane %v469, %v473
        %475 = vset.pattern.permute.xlu0 0
        %476 = vperm.xlu0 %475, %v474
        %v477 = vpop.permute.xlu0 %476
        %v479 = vadd.f32 %v454, %v477
        %v480 = vadd.f32 %v456, %v477
        %v481 = vadd.f32 %v458, %v477
        %v482 = vadd.f32 %v460, %v477
        %v483 = vadd.f32 %v462, %v477
        %v484 = vadd.f32 %v464, %v477
        %v485 = vadd.f32 %v466, %v477
        %v486 = vadd.f32 %v468, %v477
        %v487 = vmul.f32 %v479, 1.442695
        %v488 = vpow.pop %v487
        %v489 = vmul.f32 %v480, 1.442695
        %v490 = vpow.pop %v489
        %v491 = vmul.f32 %v481, 1.442695
        %v492 = vpow.pop %v491
        %v493 = vmul.f32 %v482, 1.442695
        %v494 = vpow.pop %v493
        %v495 = vmul.f32 %v483, 1.442695
        %v496 = vpow.pop %v495
        %v497 = vmul.f32 %v484, 1.442695
        %v498 = vpow.pop %v497
        %v499 = vmul.f32 %v485, 1.442695
        %v500 = vpow.pop %v499
        %v501 = vmul.f32 %v486, 1.442695
        %v502 = vpow.pop %v501
        %v511 = vlaneseq
        %v512 = vand.u32 %v511, 127
        %v513 = vlaneseq
        %v514 = vshrl.u32 %v513, 7
        %v515 = vsub.s32 %v512, %v514
        %v516 = vrot.slane %v488, %v515
        %v517 = vlaneseq
        %v518 = vshrl.u32 %v517, 7
        %v519 = vsub.s32 %v512, %v518
        %v520 = vrot.slane %v490, %v519
        %v521 = vlaneseq
        %v522 = vshrl.u32 %v521, 7
        %v523 = vsub.s32 %v512, %v522
        %v524 = vrot.slane %v492, %v523
        %v525 = vlaneseq
        %v526 = vshrl.u32 %v525, 7
        %v527 = vsub.s32 %v512, %v526
        %v528 = vrot.slane %v494, %v527
        %v529 = vlaneseq
        %v530 = vshrl.u32 %v529, 7
        %v531 = vsub.s32 %v512, %v530
        %v532 = vrot.slane %v496, %v531
        %v533 = vlaneseq
        %v534 = vshrl.u32 %v533, 7
        %v535 = vsub.s32 %v512, %v534
        %v536 = vrot.slane %v498, %v535
        %v537 = vlaneseq
        %v538 = vshrl.u32 %v537, 7
        %v539 = vsub.s32 %v512, %v538
        %v540 = vrot.slane %v500, %v539
        %v541 = vlaneseq
        %v542 = vshrl.u32 %v541, 7
        %v543 = vsub.s32 %v512, %v542
        %v544 = vrot.slane %v502, %v543
        %vm545 = vcmask 1041409
        %v546 = vsel %vm545, %v520, %v516
        %vm547 = vcmask 1042434
        %v548 = vsel %vm547, %v524, %v546
        %vm549 = vcmask 1043459
        %v550 = vsel %vm549, %v528, %v548
        %vm551 = vcmask 1044484
        %v552 = vsel %vm551, %v532, %v550
        %vm553 = vcmask 1045509
        %v554 = vsel %vm553, %v536, %v552
        %vm555 = vcmask 1046534
        %v556 = vsel %vm555, %v540, %v554
        %vm557 = vcmask 1047559
        %v558 = vsel %vm557, %v544, %v556
        %vm560 = vcmask 64512
        %v561 = vsel %vm560, %v558, -inf
        %562 = vmax.xlane.f32.xlu0 %v561
        %v563 = vpop.xlane.xlu0 %562
        %v565 = vlaneseq
        %v566 = vshrl.u32 %v565, 7
        %v567 = vsub.s32 0, %v566
        %v568 = vrot.slane %v563, %v567
        %v569 = vlaneseq
        %v570 = vshrl.u32 %v569, 7
        %v571 = vsub.s32 1, %v570
        %v572 = vrot.slane %v563, %v571
        %v573 = vlaneseq
        %v574 = vshrl.u32 %v573, 7
        %v575 = vsub.s32 2, %v574
        %v576 = vrot.slane %v563, %v575
        %v577 = vlaneseq
        %v578 = vshrl.u32 %v577, 7
        %v579 = vsub.s32 3, %v578
        %v580 = vrot.slane %v563, %v579
        %v581 = vlaneseq
        %v582 = vshrl.u32 %v581, 7
        %v583 = vsub.s32 4, %v582
        %v584 = vrot.slane %v563, %v583
        %v585 = vlaneseq
        %v586 = vshrl.u32 %v585, 7
        %v587 = vsub.s32 5, %v586
        %v588 = vrot.slane %v563, %v587
        %v589 = vlaneseq
        %v590 = vshrl.u32 %v589, 7
        %v591 = vsub.s32 6, %v590
        %v592 = vrot.slane %v563, %v591
        %v593 = vlaneseq
        %v594 = vshrl.u32 %v593, 7
        %v595 = vsub.s32 7, %v594
        %v596 = vrot.slane %v563, %v595
        %v605 = vsub.f32 %v488, %v568
        %v606 = vsub.f32 %v490, %v572
        %v607 = vsub.f32 %v492, %v576
        %v608 = vsub.f32 %v494, %v580
        %v609 = vsub.f32 %v496, %v584
        %v610 = vsub.f32 %v498, %v588
        %v611 = vsub.f32 %v500, %v592
        %v612 = vsub.f32 %v502, %v596
        %v613 = vmul.f32 %v605, 1.442695
        %v614 = vpow.pop %v613
        %v615 = vmul.f32 %v606, 1.442695
        %v616 = vpow.pop %v615
        %v617 = vmul.f32 %v607, 1.442695
        %v618 = vpow.pop %v617
        %v619 = vmul.f32 %v608, 1.442695
        %v620 = vpow.pop %v619
        %v621 = vmul.f32 %v609, 1.442695
        %v622 = vpow.pop %v621
        %v623 = vmul.f32 %v610, 1.442695
        %v624 = vpow.pop %v623
        %v625 = vmul.f32 %v611, 1.442695
        %v626 = vpow.pop %v625
        %v627 = vmul.f32 %v612, 1.442695
        %v628 = vpow.pop %v627
        %637 = vset.pattern.permute.xlu0 0
        %638 = vperm.xlu0 %637, %v614
        %v639 = vpop.permute.xlu0 %638
        %640 = vset.pattern.permute.xlu0 0
        %641 = vperm.xlu0 %640, %v616
        %v642 = vpop.permute.xlu0 %641
        %643 = vset.pattern.permute.xlu0 0
        %644 = vperm.xlu0 %643, %v618
        %v645 = vpop.permute.xlu0 %644
        %646 = vset.pattern.permute.xlu0 0
        %647 = vperm.xlu0 %646, %v620
        %v648 = vpop.permute.xlu0 %647
        %649 = vset.pattern.permute.xlu0 0
        %650 = vperm.xlu0 %649, %v622
        %v651 = vpop.permute.xlu0 %650
        %652 = vset.pattern.permute.xlu0 0
        %653 = vperm.xlu0 %652, %v624
        %v654 = vpop.permute.xlu0 %653
        %655 = vset.pattern.permute.xlu0 0
        %656 = vperm.xlu0 %655, %v626
        %v657 = vpop.permute.xlu0 %656
        %658 = vset.pattern.permute.xlu0 0
        %659 = vperm.xlu0 %658, %v628
        %v660 = vpop.permute.xlu0 %659
        %v661 = vlaneseq
        %v662 = vshrl.u32 %v661, 7
        %v663 = vsub.s32 %v512, %v662
        %v664 = vrot.slane %v639, %v663
        %v665 = vlaneseq
        %v666 = vshrl.u32 %v665, 7
        %v667 = vsub.s32 %v512, %v666
        %v668 = vrot.slane %v642, %v667
        %v669 = vlaneseq
        %v670 = vshrl.u32 %v669, 7
        %v671 = vsub.s32 %v512, %v670
        %v672 = vrot.slane %v645, %v671
        %v673 = vlaneseq
        %v674 = vshrl.u32 %v673, 7
        %v675 = vsub.s32 %v512, %v674
        %v676 = vrot.slane %v648, %v675
        %v677 = vlaneseq
        %v678 = vshrl.u32 %v677, 7
        %v679 = vsub.s32 %v512, %v678
        %v680 = vrot.slane %v651, %v679
        %v681 = vlaneseq
        %v682 = vshrl.u32 %v681, 7
        %v683 = vsub.s32 %v512, %v682
        %v684 = vrot.slane %v654, %v683
        %v685 = vlaneseq
        %v686 = vshrl.u32 %v685, 7
        %v687 = vsub.s32 %v512, %v686
        %v688 = vrot.slane %v657, %v687
        %v689 = vlaneseq
        %v690 = vshrl.u32 %v689, 7
        %v691 = vsub.s32 %v512, %v690
        %v692 = vrot.slane %v660, %v691
        %v693 = vsel %vm545, %v668, %v664
        %v694 = vsel %vm547, %v672, %v693
        %v695 = vsel %vm549, %v676, %v694
        %v696 = vsel %vm551, %v680, %v695
        %v697 = vsel %vm553, %v684, %v696
        %v698 = vsel %vm555, %v688, %v697
        %v699 = vsel %vm557, %v692, %v698
        %v701 = vsel %vm560, %v699, 0.0
        %702 = vadd.xlane.f32.xlu0 %v701
        %v703 = vpop.xlane.xlu0 %702
        %v704 = vrcp.pop %v703
        %v705 = vunpack.c.l.bf16 %v262
        %v706 = vunpack.c.l.bf16 %v263
        %v707 = vunpack.c.l.bf16 %v264
        %v708 = vunpack.c.l.bf16 %v265
        %v709 = vunpack.c.l.bf16 %v266
        %v710 = vunpack.c.l.bf16 %v267
        %v711 = vunpack.c.l.bf16 %v268
        %v712 = vunpack.c.l.bf16 %v269
        %v721 = vmul.f32 %v705, %v639
        %v722 = vmul.f32 %v706, %v642
        %v723 = vmul.f32 %v707, %v645
        %v724 = vmul.f32 %v708, %v648
        %v725 = vmul.f32 %v709, %v651
        %v726 = vmul.f32 %v710, %v654
        %v727 = vmul.f32 %v711, %v657
        %v728 = vmul.f32 %v712, %v660
        %v729 = vrot.slane %v721, 4
        %v730 = vadd.f32 %v721, %v729
        %v731 = vrot.slane %v730, 2
        %v732 = vadd.f32 %v730, %v731
        %v733 = vrot.slane %v732, 1
        %v734 = vadd.f32 %v732, %v733
        %v735 = vrot.slane %v722, 4
        %v736 = vadd.f32 %v722, %v735
        %v737 = vrot.slane %v736, 2
        %v738 = vadd.f32 %v736, %v737
        %v739 = vrot.slane %v738, 1
        %v740 = vadd.f32 %v738, %v739
        %v741 = vrot.slane %v723, 4
        %v742 = vadd.f32 %v723, %v741
        %v743 = vrot.slane %v742, 2
        %v744 = vadd.f32 %v742, %v743
        %v745 = vrot.slane %v744, 1
        %v746 = vadd.f32 %v744, %v745
        %v747 = vrot.slane %v724, 4
        %v748 = vadd.f32 %v724, %v747
        %v749 = vrot.slane %v748, 2
        %v750 = vadd.f32 %v748, %v749
        %v751 = vrot.slane %v750, 1
        %v752 = vadd.f32 %v750, %v751
        %v753 = vrot.slane %v725, 4
        %v754 = vadd.f32 %v725, %v753
        %v755 = vrot.slane %v754, 2
        %v756 = vadd.f32 %v754, %v755
        %v757 = vrot.slane %v756, 1
        %v758 = vadd.f32 %v756, %v757
        %v759 = vrot.slane %v726, 4
        %v760 = vadd.f32 %v726, %v759
        %v761 = vrot.slane %v760, 2
        %v762 = vadd.f32 %v760, %v761
        %v763 = vrot.slane %v762, 1
        %v764 = vadd.f32 %v762, %v763
        %v765 = vrot.slane %v727, 4
        %v766 = vadd.f32 %v727, %v765
        %v767 = vrot.slane %v766, 2
        %v768 = vadd.f32 %v766, %v767
        %v769 = vrot.slane %v768, 1
        %v770 = vadd.f32 %v768, %v769
        %v771 = vrot.slane %v728, 4
        %v772 = vadd.f32 %v728, %v771
        %v773 = vrot.slane %v772, 2
        %v774 = vadd.f32 %v772, %v773
        %v775 = vrot.slane %v774, 1
        %v776 = vadd.f32 %v774, %v775
        %v778 = vrot.slane %v704, 1
        %v779 = vrot.slane %v704, 2
        %v780 = vrot.slane %v704, 3
        %v781 = vrot.slane %v704, 4
        %v782 = vrot.slane %v704, 5
        %v783 = vrot.slane %v704, 6
        %v784 = vrot.slane %v704, 7
        %v793 = vmul.f32 %v734, %v704
        %v794 = vmul.f32 %v740, %v778
        %v795 = vmul.f32 %v746, %v779
        %v796 = vmul.f32 %v752, %v780
        %v797 = vmul.f32 %v758, %v781
        %v798 = vmul.f32 %v764, %v782
        %v799 = vmul.f32 %v770, %v783
        %v800 = vmul.f32 %v776, %v784
        %v809 = vrot.slane %v794, 7
        %v810 = vsel %vm545, %v809, %v793
        %v811 = vrot.slane %v795, 6
        %v812 = vsel %vm547, %v811, %v810
        %v813 = vrot.slane %v796, 5
        %v814 = vsel %vm549, %v813, %v812
        %v815 = vrot.slane %v797, 4
        %v816 = vsel %vm551, %v815, %v814
        %v817 = vrot.slane %v798, 3
        %v818 = vsel %vm553, %v817, %v816
        %v819 = vrot.slane %v799, 2
        %v820 = vsel %vm555, %v819, %v818
        %v821 = vrot.slane %v800, 1
        %v822 = vsel %vm557, %v821, %v820
        %824 = vst [vmem:[%s259] sm:$0xff] %v822
        %s825 = sand.u32 %s143, 1
        %s826 = scalar_lea.sflag [#allocation5], %s825
        %s827 = sand.u32 %s143, 1
        %s828 = smul.addr %s827, 8
        %s829 = scalar_lea.vmem [#allocation8], %s828
        // Predicated region
        $region49: #{tpu_custom_call.1} parent=39 // pred_check
          %p830 = pneg %p153
        $region50: #{tpu_custom_call.1} parent=39 // pred_check_branch
          %832 = sbr.rel (%p830) target = $region52
        $region51: #{tpu_custom_call.1} parent=39 // pred_region
          %s834 = ssub.s32 128, 128
          %835 = vsyncadd %s826, %s834
          %s836 = smul.addr %s25, 128
          %s837 = scalar_lea.hbm %s5, %s836
          %s839 = sshll.u32 %s829, 4
          %s840 = int_to_ptr.vmem [resolvable:$true] %s839
          %842 = dma.vmem_to_hbm [thread:$0]  %s840, 128, %s837, %s826
        $region52: #{tpu_custom_call.1} parent=39 // pred_fallthru
          _
      $region40: #{tpu_custom_call.1} parent=5 // pred_fallthru
        _
      %p843 = scmp.le.s32.totalorder 2, %s20
      // Predicated region
      $region53: #{tpu_custom_call.1} parent=5 // pred_check
        %p844 = pneg %p843
      $region54: #{tpu_custom_call.1} parent=5 // pred_check_branch
        %846 = sbr.rel (%p844) target = $region56
      $region55: #{tpu_custom_call.1} parent=5 // pred_region
        %s847 = ssub.s32 %s20, 2
        // Predicated region
        $region57: #{tpu_custom_call.1} parent=55 // pred_check
          %p848 = pneg %p159
        $region58: #{tpu_custom_call.1} parent=55 // pred_check_branch
          %850 = sbr.rel (%p848) target = $region60
        $region59: #{tpu_custom_call.1} parent=55 // pred_region
          %s851 = sand.u32 %s144, 1
          %s852 = scalar_lea.sflag [#allocation5], %s851
          %s853 = sand.u32 %s144, 1
          %s854 = smul.addr %s853, 8
          %s855 = scalar_lea.vmem [#allocation8], %s854
          %856 = dma.done %s852, 128
        $region60: #{tpu_custom_call.1} parent=55 // pred_fallthru
          _
      $region56: #{tpu_custom_call.1} parent=5 // pred_fallthru
        _
    $region6: #{tpu_custom_call.1} parent=1 // loop_footer
      %s24 = sadd.s32 1, %s20
    $region7: #{tpu_custom_call.1} parent=1 // loop_footer_branch
      %19 = sbr.rel target = $region3
    $region8: #{tpu_custom_call.1} parent=1 // loop_exit
      _
    %857 = vsyncpa [#allocation4], 1
    %s858 = scalar_lea.sflag [#allocation4], 1
    %859 = vsyncpa %s858, 1
    %860 = vsyncpa [#allocation7], 1
    %861 = vsyncpa [#allocation5], 1
    %s862 = scalar_lea.sflag [#allocation5], 1
    %863 = vsyncpa %s862, 1

</llo_original>
